<compile_context>
chip_gen: v5e
topology: v5e:2x2
jax: 0.10.0
libtpu: 0.0.40
codegen_flags: <defaults>
</compile_context>

<pallas_src>
import functools

import jax
import jax.numpy as jnp
from jax import lax
from jax.experimental import pallas as pl
from jax.experimental.pallas import tpu as pltpu


def _round_up(x, m):
    return (x + m - 1) // m * m


def _gru_recurrent_kernel(gi_ref, whh_ref, bhn_ref, y_ref, h_scratch, *, hp, tchunk):
    """Recurrent part of one GRU layer.

    Grid axis 0 walks time-chunks sequentially. gi_ref already contains
    x @ W_ih + b_ih (+ folded b_hr, b_hz), so each step only does the sequential
    h @ W_hh matmul plus gate elementwise math.
    """
    c = pl.program_id(0)

    @pl.when(c == 0)
    def _():
        h_scratch[...] = jnp.zeros_like(h_scratch)

    whh = whh_ref[...]                      # (H_pad, 3*H_pad) bf16, resident
    bhn = bhn_ref[...]                      # (1, H_pad) f32

    def step(i, h):
        gi = gi_ref[i].astype(jnp.float32)  # (B, 3*H_pad)
        gh = jnp.dot(h.astype(jnp.bfloat16), whh,
                     preferred_element_type=jnp.float32)          # (B, 3*H_pad)
        # gate slices at 128-aligned offsets (hp is a multiple of 128)
        r = jax.nn.sigmoid(gi[:, :hp] + gh[:, :hp])
        z = jax.nn.sigmoid(gi[:, hp:2 * hp] + gh[:, hp:2 * hp])
        n = jnp.tanh(gi[:, 2 * hp:] + r * (gh[:, 2 * hp:] + bhn))
        h_new = (1.0 - z) * n + z * h
        y_ref[i] = h_new.astype(y_ref.dtype)
        return h_new

    h_final = lax.fori_loop(0, tchunk, step, h_scratch[...], unroll=True)
    h_scratch[...] = h_final


def gru_recurrence(gi, w_hh, b_hn, *, tchunk):
    """gi: (T_pad, B, 3*H_pad) bf16; w_hh: (H_pad, 3*H_pad) bf16; b_hn: (1, H_pad) f32.
    Returns y: (T_pad, B, H_pad) f32."""
    Tp, B, threeHp = gi.shape
    Hp = threeHp // 3
    assert Tp % tchunk == 0

    kernel = functools.partial(_gru_recurrent_kernel, hp=Hp, tchunk=tchunk)

    y = pl.pallas_call(
        kernel,
        out_shape=jax.ShapeDtypeStruct((Tp, B, Hp), jnp.float32),
        grid_spec=pltpu.PrefetchScalarGridSpec(
            num_scalar_prefetch=0,
            grid=(Tp // tchunk,),
            in_specs=[
                pl.BlockSpec((tchunk, B, threeHp), lambda c: (c, 0, 0)),  # gi chunk
                pl.BlockSpec((Hp, threeHp), lambda c: (0, 0)),            # W_hh (resident)
                pl.BlockSpec((1, Hp), lambda c: (0, 0)),                  # b_hn (resident)
            ],
            out_specs=pl.BlockSpec((tchunk, B, Hp), lambda c: (c, 0, 0)),
            scratch_shapes=[pltpu.VMEM((B, Hp), jnp.float32)],            # carried h
        ),
        compiler_params=pltpu.CompilerParams(
            dimension_semantics=("arbitrary",)),  # time is sequential
    )(gi, w_hh, b_hn)
    return y


class EncoderRNNPallas:
    """JAX/Pallas equivalent of the PyTorch EncoderRNN module (forward only)."""

    def __init__(self, input_size, hidden_size, num_layers, key, *, t_chunk=16):
        self.input_size = input_size
        self.hidden_size = hidden_size
        self.num_layers = num_layers
        self.t_chunk = t_chunk

        H = hidden_size * 30
        Hp = _round_up(H, 128)
        self.H, self.Hp = H, Hp

        bound = 1.0 / (H ** 0.5)   # PyTorch U(-1/sqrt(H), 1/sqrt(H)) init
        self.params = []
        self.ref_params = []       # unpadded f32 copies for the pure-JAX reference
        for layer in range(num_layers):
            d_in = input_size if layer == 0 else H
            d_in_pad = input_size if layer == 0 else Hp
            key, k1, k2, k3, k4 = jax.random.split(key, 5)
            w_ih = jax.random.uniform(k1, (d_in, 3, H), jnp.float32, -bound, bound)
            w_hh = jax.random.uniform(k2, (H, 3, H), jnp.float32, -bound, bound)
            b_ih = jax.random.uniform(k3, (3, H), jnp.float32, -bound, bound)
            b_hh = jax.random.uniform(k4, (3, H), jnp.float32, -bound, bound)
            self.ref_params.append((w_ih, w_hh, b_ih, b_hh))

            # Pad each gate block H -> Hp (lane-aligned) and the recurrent dim to Hp.
            # Padded rows/cols are zero, so padded hidden columns stay exactly zero.
            w_ih_p = jnp.zeros((d_in_pad, 3, Hp), jnp.float32).at[:d_in, :, :H].set(w_ih)
            w_hh_p = jnp.zeros((Hp, 3, Hp), jnp.float32).at[:H, :, :H].set(w_hh)
            b_ih_p = jnp.zeros((3, Hp), jnp.float32).at[:, :H].set(b_ih)
            b_hh_p = jnp.zeros((3, Hp), jnp.float32).at[:, :H].set(b_hh)

            # Fold b_hr, b_hz into the precomputed input projection; b_hn must stay
            # inside r * (h@W_hn + b_hn), so it goes to the kernel on its own.
            b_fold = b_ih_p.at[0].add(b_hh_p[0]).at[1].add(b_hh_p[1])

            self.params.append(dict(
                w_ih=w_ih_p.reshape(d_in_pad, 3 * Hp).astype(jnp.bfloat16),
                w_hh=w_hh_p.reshape(Hp, 3 * Hp).astype(jnp.bfloat16),
                b_fold=b_fold.reshape(1, 3 * Hp).astype(jnp.float32),
                b_hn=b_hh_p[2].reshape(1, Hp).astype(jnp.float32),
            ))

    def __call__(self, x_btd):
        """x_btd: (B, T, input_size), batch_first like the PyTorch module.
        Returns (output (B, T, H), hidden (num_layers, B, H))."""
        B, T, _ = x_btd.shape
        H, Hp = self.H, self.Hp
        tchunk = max(1, min(self.t_chunk, T))
        Tp = _round_up(T, tchunk)

        # time-major; zero-pad the tail of the time axis to a chunk multiple.
        # (Padded steps only run AFTER all real steps, so they never affect y[:T].)
        x_tbd = jnp.transpose(x_btd, (1, 0, 2)).astype(jnp.float32)
        x_tbd = jnp.pad(x_tbd, ((0, Tp - T), (0, 0), (0, 0)))

        layer_in = x_tbd                              # (Tp, B, D) then (Tp, B, Hp)
        h_finals = []
        for p in self.params:
            d_in = layer_in.shape[-1]
            # Hoisted input projection: one (Tp*B, d_in) x (d_in, 3*Hp) bf16 matmul.
            gi = jnp.dot(layer_in.reshape(Tp * B, d_in).astype(jnp.bfloat16),
                         p["w_ih"], preferred_element_type=jnp.float32)
            gi = gi.reshape(Tp, B, 3 * Hp) + p["b_fold"]
            gi = gi.astype(jnp.bfloat16)

            y = gru_recurrence(gi, p["w_hh"], p["b_hn"], tchunk=tchunk)
            h_finals.append(y[T - 1, :, :H])          # final hidden of this layer
            layer_in = y                              # padded columns remain zero
            # TODO(synk): for num_layers > 1, layers could be fused into one
            # pallas_call (stage y in VMEM) to avoid the HBM round trip.

        output = jnp.transpose(layer_in[:T, :, :H], (1, 0, 2))   # (B, T, H)
        hidden = jnp.stack(h_finals, axis=0)                     # (num_layers, B, H)
        return output, hidden


def gru_reference(x_btd, ref_params, H):
    """Pure-JAX f32 reference matching torch.nn.GRU(batch_first=True), h0 = 0."""
    x = jnp.transpose(x_btd, (1, 0, 2)).astype(jnp.float32)   # (T, B, D)
    B = x.shape[1]
    hs = []
    inp = x
    for (w_ih, w_hh, b_ih, b_hh) in ref_params:
        def step(h, x_t):
            gi = jnp.einsum('bd,dgh->bgh', x_t, w_ih) + b_ih
            gh = jnp.einsum('bk,kgh->bgh', h, w_hh) + b_hh
            r = jax.nn.sigmoid(gi[:, 0] + gh[:, 0])
            z = jax.nn.sigmoid(gi[:, 1] + gh[:, 1])
            n = jnp.tanh(gi[:, 2] + r * gh[:, 2])
            h_new = (1.0 - z) * n + z * h
            return h_new, h_new
        h0 = jnp.zeros((B, H), jnp.float32)
        h_last, ys = lax.scan(step, h0, inp)
        hs.append(h_last)
        inp = ys
    return jnp.transpose(inp, (1, 0, 2)), jnp.stack(hs, axis=0)


if __name__ == "__main__":
    key = jax.random.PRNGKey(0)
    key, k_x, k_p = jax.random.split(key, 3)

    batch, seq, input_size = 2, 8, 4
    hidden_size, num_layers = 4, 2          # -> H = hidden_size * 30 = 120

    model = EncoderRNNPallas(input_size, hidden_size, num_layers, k_p)

    x = jax.random.normal(k_x, (batch, seq, input_size), jnp.float32)

    output, hidden = model(x)
    output = jax.block_until_ready(output)
    hidden = jax.block_until_ready(hidden)

    H = hidden_size * 30
    assert output.shape == (batch, seq, H), output.shape
    assert hidden.shape == (num_layers, batch, H), hidden.shape
    assert jnp.all(jnp.isfinite(output)) and jnp.all(jnp.isfinite(hidden))
    # final hidden of last layer must equal last time step of output
    assert jnp.allclose(hidden[-1], output[:, -1, :], atol=1e-6)

    # numerical check against a pure-JAX f32 GRU reference (bf16 matmuls -> loose tol)
    out_ref, hid_ref = gru_reference(x, model.ref_params, H)
    assert float(jnp.max(jnp.abs(output - out_ref))) < 5e-2
    assert float(jnp.max(jnp.abs(hidden - hid_ref))) < 5e-2

    print("KERNEL_OK")
</pallas_src>

<mosaic_0001>
module attributes {stable_mosaic.version = 11 : i64} {
  func.func @_gru_recurrent_kernel(%arg0: i32, %arg1: memref<8x2x384xbf16, #tpu.memory_space<vmem>>, %arg2: memref<128x384xbf16, #tpu.memory_space<vmem>>, %arg3: memref<1x128xf32, #tpu.memory_space<vmem>>, %arg4: memref<8x2x128xf32, #tpu.memory_space<vmem>>, %arg5: memref<2x128xf32, #tpu.memory_space<vmem>>) attributes {dimension_semantics = [#tpu.dimension_semantics<arbitrary>], iteration_bounds = array<i64: 1>, scalar_prefetch = 0 : i64, scratch_operands = 1 : i64, tpu.core_type = #tpu.core_type<tc>, window_params = [{transform_indices = @transform_0, window_bounds = array<i64: 8, 2, 384>}, {pipeline_mode = #tpu.pipeline_mode<synchronous>, transform_indices = @transform_1, window_bounds = array<i64: 128, 384>}, {pipeline_mode = #tpu.pipeline_mode<synchronous>, transform_indices = @transform_2, window_bounds = array<i64: 1, 128>}, {transform_indices = @transform_3, window_bounds = array<i64: 8, 2, 128>}]} {
    %c0_i32 = arith.constant 0 : i32
    %0 = arith.cmpi eq, %arg0, %c0_i32 : i32
    %1 = arith.extui %0 : i1 to i32
    %c0_i32_0 = arith.constant 0 : i32
    %2 = arith.cmpi ne, %1, %c0_i32_0 : i32
    scf.if %2 {
      %cst_72 = arith.constant 0.000000e+00 : f32
      %311 = vector.broadcast %cst_72 : f32 to vector<2x128xf32>
      %c0_73 = arith.constant 0 : index
      %c0_74 = arith.constant 0 : index
      %312 = vector.load %arg5[%c0_73, %c0_74] : memref<2x128xf32, #tpu.memory_space<vmem>>, vector<2x128xf32>
      tpu.vector_store %arg5[%c0_73, %c0_74], %311 {strides = array<i32>} : memref<2x128xf32, #tpu.memory_space<vmem>>, vector<2x128xf32>,
    } else {
    }
    %c0 = arith.constant 0 : index
    %c0_1 = arith.constant 0 : index
    %3 = vector.load %arg2[%c0, %c0_1] : memref<128x384xbf16, #tpu.memory_space<vmem>>, vector<128x384xbf16>
    %c0_2 = arith.constant 0 : index
    %c0_3 = arith.constant 0 : index
    %4 = vector.load %arg3[%c0_2, %c0_3] : memref<1x128xf32, #tpu.memory_space<vmem>>, vector<1x128xf32>
    %c0_4 = arith.constant 0 : index
    %c0_5 = arith.constant 0 : index
    %5 = vector.load %arg5[%c0_4, %c0_5] : memref<2x128xf32, #tpu.memory_space<vmem>>, vector<2x128xf32>
    %c0_i32_6 = arith.constant 0 : i32
    %6 = arith.index_cast %c0_i32_6 : i32 to index
    %c0_7 = arith.constant 0 : index
    %c0_8 = arith.constant 0 : index
    %7 = vector.load %arg1[%6, %c0_7, %c0_8] : memref<8x2x384xbf16, #tpu.memory_space<vmem>>, vector<1x2x384xbf16>
    %8 = vector.shape_cast %7 : vector<1x2x384xbf16> to vector<2x384xbf16>
    %9 = arith.extf %8 : vector<2x384xbf16> to vector<2x384xf32>
    %10 = arith.truncf %5 : vector<2x128xf32> to vector<2x128xbf16>
    %cst = arith.constant dense<0.000000e+00> : vector<2x384xf32>
    %11 = tpu.matmul %10, %3, %cst {dimension_numbers = #tpu.dot_dimension_numbers<[1], [0], [0], [1], [0, 0, 1, 1], [], []>} : vector<2x128xbf16>, vector<128x384xbf16>, vector<2x384xf32> -> vector<2x384xf32>
    %12 = vector.extract_strided_slice %9 {offsets = [0, 0], sizes = [2, 128], strides = [1, 1]} : vector<2x384xf32> to vector<2x128xf32>
    %13 = vector.extract_strided_slice %11 {offsets = [0, 0], sizes = [2, 128], strides = [1, 1]} : vector<2x384xf32> to vector<2x128xf32>
    %14 = arith.addf %12, %13 : vector<2x128xf32>
    %15 = arith.negf %14 : vector<2x128xf32>
    %16 = math.exp %15 : vector<2x128xf32>
    %cst_9 = arith.constant 1.000000e+00 : f32
    %17 = vector.broadcast %cst_9 : f32 to vector<2x128xf32>
    %18 = arith.addf %17, %16 : vector<2x128xf32>
    %19 = arith.divf %17, %18 : vector<2x128xf32>
    %20 = vector.extract_strided_slice %9 {offsets = [0, 128], sizes = [2, 128], strides = [1, 1]} : vector<2x384xf32> to vector<2x128xf32>
    %21 = vector.extract_strided_slice %11 {offsets = [0, 128], sizes = [2, 128], strides = [1, 1]} : vector<2x384xf32> to vector<2x128xf32>
    %22 = arith.addf %20, %21 : vector<2x128xf32>
    %23 = arith.negf %22 : vector<2x128xf32>
    %24 = math.exp %23 : vector<2x128xf32>
    %cst_10 = arith.constant 1.000000e+00 : f32
    %25 = vector.broadcast %cst_10 : f32 to vector<2x128xf32>
    %26 = arith.addf %25, %24 : vector<2x128xf32>
    %27 = arith.divf %25, %26 : vector<2x128xf32>
    %28 = vector.extract_strided_slice %9 {offsets = [0, 256], sizes = [2, 128], strides = [1, 1]} : vector<2x384xf32> to vector<2x128xf32>
    %29 = vector.extract_strided_slice %11 {offsets = [0, 256], sizes = [2, 128], strides = [1, 1]} : vector<2x384xf32> to vector<2x128xf32>
    %30 = vector.broadcast %4 : vector<1x128xf32> to vector<2x128xf32>
    %31 = arith.addf %29, %30 : vector<2x128xf32>
    %32 = arith.mulf %19, %31 : vector<2x128xf32>
    %33 = arith.addf %28, %32 : vector<2x128xf32>
    %34 = math.tanh %33 : vector<2x128xf32>
    %cst_11 = arith.constant 1.000000e+00 : f32
    %35 = vector.broadcast %cst_11 : f32 to vector<2x128xf32>
    %36 = arith.subf %35, %27 : vector<2x128xf32>
    %37 = arith.mulf %36, %34 : vector<2x128xf32>
    %38 = arith.mulf %27, %5 : vector<2x128xf32>
    %39 = arith.addf %37, %38 : vector<2x128xf32>
    %40 = arith.index_cast %c0_i32_6 : i32 to index
    %c0_12 = arith.constant 0 : index
    %c0_13 = arith.constant 0 : index
    %41 = vector.load %arg4[%40, %c0_12, %c0_13] : memref<8x2x128xf32, #tpu.memory_space<vmem>>, vector<1x2x128xf32>
    %42 = vector.shape_cast %41 : vector<1x2x128xf32> to vector<2x128xf32>
    %43 = vector.shape_cast %39 : vector<2x128xf32> to vector<1x2x128xf32>
    tpu.vector_store %arg4[%40, %c0_12, %c0_13], %43 {strides = array<i32>} : memref<8x2x128xf32, #tpu.memory_space<vmem>>, vector<1x2x128xf32>,
    %c1_i32 = arith.constant 1 : i32
    %44 = arith.index_cast %c1_i32 : i32 to index
    %c0_14 = arith.constant 0 : index
    %c0_15 = arith.constant 0 : index
    %45 = vector.load %arg1[%44, %c0_14, %c0_15] : memref<8x2x384xbf16, #tpu.memory_space<vmem>>, vector<1x2x384xbf16>
    %46 = vector.shape_cast %45 : vector<1x2x384xbf16> to vector<2x384xbf16>
    %47 = arith.extf %46 : vector<2x384xbf16> to vector<2x384xf32>
    %48 = arith.truncf %39 : vector<2x128xf32> to vector<2x128xbf16>
    %cst_16 = arith.constant dense<0.000000e+00> : vector<2x384xf32>
    %49 = tpu.matmul %48, %3, %cst_16 {dimension_numbers = #tpu.dot_dimension_numbers<[1], [0], [0], [1], [0, 0, 1, 1], [], []>} : vector<2x128xbf16>, vector<128x384xbf16>, vector<2x384xf32> -> vector<2x384xf32>
    %50 = vector.extract_strided_slice %47 {offsets = [0, 0], sizes = [2, 128], strides = [1, 1]} : vector<2x384xf32> to vector<2x128xf32>
    %51 = vector.extract_strided_slice %49 {offsets = [0, 0], sizes = [2, 128], strides = [1, 1]} : vector<2x384xf32> to vector<2x128xf32>
    %52 = arith.addf %50, %51 : vector<2x128xf32>
    %53 = arith.negf %52 : vector<2x128xf32>
    %54 = math.exp %53 : vector<2x128xf32>
    %cst_17 = arith.constant 1.000000e+00 : f32
    %55 = vector.broadcast %cst_17 : f32 to vector<2x128xf32>
    %56 = arith.addf %55, %54 : vector<2x128xf32>
    %57 = arith.divf %55, %56 : vector<2x128xf32>
    %58 = vector.extract_strided_slice %47 {offsets = [0, 128], sizes = [2, 128], strides = [1, 1]} : vector<2x384xf32> to vector<2x128xf32>
    %59 = vector.extract_strided_slice %49 {offsets = [0, 128], sizes = [2, 128], strides = [1, 1]} : vector<2x384xf32> to vector<2x128xf32>
    %60 = arith.addf %58, %59 : vector<2x128xf32>
    %61 = arith.negf %60 : vector<2x128xf32>
    %62 = math.exp %61 : vector<2x128xf32>
    %cst_18 = arith.constant 1.000000e+00 : f32
    %63 = vector.broadcast %cst_18 : f32 to vector<2x128xf32>
    %64 = arith.addf %63, %62 : vector<2x128xf32>
    %65 = arith.divf %63, %64 : vector<2x128xf32>
    %66 = vector.extract_strided_slice %47 {offsets = [0, 256], sizes = [2, 128], strides = [1, 1]} : vector<2x384xf32> to vector<2x128xf32>
    %67 = vector.extract_strided_slice %49 {offsets = [0, 256], sizes = [2, 128], strides = [1, 1]} : vector<2x384xf32> to vector<2x128xf32>
    %68 = vector.broadcast %4 : vector<1x128xf32> to vector<2x128xf32>
    %69 = arith.addf %67, %68 : vector<2x128xf32>
    %70 = arith.mulf %57, %69 : vector<2x128xf32>
    %71 = arith.addf %66, %70 : vector<2x128xf32>
    %72 = math.tanh %71 : vector<2x128xf32>
    %cst_19 = arith.constant 1.000000e+00 : f32
    %73 = vector.broadcast %cst_19 : f32 to vector<2x128xf32>
    %74 = arith.subf %73, %65 : vector<2x128xf32>
    %75 = arith.mulf %74, %72 : vector<2x128xf32>
    %76 = arith.mulf %65, %39 : vector<2x128xf32>
    %77 = arith.addf %75, %76 : vector<2x128xf32>
    %78 = arith.index_cast %c1_i32 : i32 to index
    %c0_20 = arith.constant 0 : index
    %c0_21 = arith.constant 0 : index
    %79 = vector.load %arg4[%78, %c0_20, %c0_21] : memref<8x2x128xf32, #tpu.memory_space<vmem>>, vector<1x2x128xf32>
    %80 = vector.shape_cast %79 : vector<1x2x128xf32> to vector<2x128xf32>
    %81 = vector.shape_cast %77 : vector<2x128xf32> to vector<1x2x128xf32>
    tpu.vector_store %arg4[%78, %c0_20, %c0_21], %81 {strides = array<i32>} : memref<8x2x128xf32, #tpu.memory_space<vmem>>, vector<1x2x128xf32>,
    %c2_i32 = arith.constant 2 : i32
    %82 = arith.index_cast %c2_i32 : i32 to index
    %c0_22 = arith.constant 0 : index
    %c0_23 = arith.constant 0 : index
    %83 = vector.load %arg1[%82, %c0_22, %c0_23] : memref<8x2x384xbf16, #tpu.memory_space<vmem>>, vector<1x2x384xbf16>
    %84 = vector.shape_cast %83 : vector<1x2x384xbf16> to vector<2x384xbf16>
    %85 = arith.extf %84 : vector<2x384xbf16> to vector<2x384xf32>
    %86 = arith.truncf %77 : vector<2x128xf32> to vector<2x128xbf16>
    %cst_24 = arith.constant dense<0.000000e+00> : vector<2x384xf32>
    %87 = tpu.matmul %86, %3, %cst_24 {dimension_numbers = #tpu.dot_dimension_numbers<[1], [0], [0], [1], [0, 0, 1, 1], [], []>} : vector<2x128xbf16>, vector<128x384xbf16>, vector<2x384xf32> -> vector<2x384xf32>
    %88 = vector.extract_strided_slice %85 {offsets = [0, 0], sizes = [2, 128], strides = [1, 1]} : vector<2x384xf32> to vector<2x128xf32>
    %89 = vector.extract_strided_slice %87 {offsets = [0, 0], sizes = [2, 128], strides = [1, 1]} : vector<2x384xf32> to vector<2x128xf32>
    %90 = arith.addf %88, %89 : vector<2x128xf32>
    %91 = arith.negf %90 : vector<2x128xf32>
    %92 = math.exp %91 : vector<2x128xf32>
    %cst_25 = arith.constant 1.000000e+00 : f32
    %93 = vector.broadcast %cst_25 : f32 to vector<2x128xf32>
    %94 = arith.addf %93, %92 : vector<2x128xf32>
    %95 = arith.divf %93, %94 : vector<2x128xf32>
    %96 = vector.extract_strided_slice %85 {offsets = [0, 128], sizes = [2, 128], strides = [1, 1]} : vector<2x384xf32> to vector<2x128xf32>
    %97 = vector.extract_strided_slice %87 {offsets = [0, 128], sizes = [2, 128], strides = [1, 1]} : vector<2x384xf32> to vector<2x128xf32>
    %98 = arith.addf %96, %97 : vector<2x128xf32>
    %99 = arith.negf %98 : vector<2x128xf32>
    %100 = math.exp %99 : vector<2x128xf32>
    %cst_26 = arith.constant 1.000000e+00 : f32
    %101 = vector.broadcast %cst_26 : f32 to vector<2x128xf32>
    %102 = arith.addf %101, %100 : vector<2x128xf32>
    %103 = arith.divf %101, %102 : vector<2x128xf32>
    %104 = vector.extract_strided_slice %85 {offsets = [0, 256], sizes = [2, 128], strides = [1, 1]} : vector<2x384xf32> to vector<2x128xf32>
    %105 = vector.extract_strided_slice %87 {offsets = [0, 256], sizes = [2, 128], strides = [1, 1]} : vector<2x384xf32> to vector<2x128xf32>
    %106 = vector.broadcast %4 : vector<1x128xf32> to vector<2x128xf32>
    %107 = arith.addf %105, %106 : vector<2x128xf32>
    %108 = arith.mulf %95, %107 : vector<2x128xf32>
    %109 = arith.addf %104, %108 : vector<2x128xf32>
    %110 = math.tanh %109 : vector<2x128xf32>
    %cst_27 = arith.constant 1.000000e+00 : f32
    %111 = vector.broadcast %cst_27 : f32 to vector<2x128xf32>
    %112 = arith.subf %111, %103 : vector<2x128xf32>
    %113 = arith.mulf %112, %110 : vector<2x128xf32>
    %114 = arith.mulf %103, %77 : vector<2x128xf32>
    %115 = arith.addf %113, %114 : vector<2x128xf32>
    %116 = arith.index_cast %c2_i32 : i32 to index
    %c0_28 = arith.constant 0 : index
    %c0_29 = arith.constant 0 : index
    %117 = vector.load %arg4[%116, %c0_28, %c0_29] : memref<8x2x128xf32, #tpu.memory_space<vmem>>, vector<1x2x128xf32>
    %118 = vector.shape_cast %117 : vector<1x2x128xf32> to vector<2x128xf32>
    %119 = vector.shape_cast %115 : vector<2x128xf32> to vector<1x2x128xf32>
    tpu.vector_store %arg4[%116, %c0_28, %c0_29], %119 {strides = array<i32>} : memref<8x2x128xf32, #tpu.memory_space<vmem>>, vector<1x2x128xf32>,
    %c3_i32 = arith.constant 3 : i32
    %120 = arith.index_cast %c3_i32 : i32 to index
    %c0_30 = arith.constant 0 : index
    %c0_31 = arith.constant 0 : index
    %121 = vector.load %arg1[%120, %c0_30, %c0_31] : memref<8x2x384xbf16, #tpu.memory_space<vmem>>, vector<1x2x384xbf16>
    %122 = vector.shape_cast %121 : vector<1x2x384xbf16> to vector<2x384xbf16>
    %123 = arith.extf %122 : vector<2x384xbf16> to vector<2x384xf32>
    %124 = arith.truncf %115 : vector<2x128xf32> to vector<2x128xbf16>
    %cst_32 = arith.constant dense<0.000000e+00> : vector<2x384xf32>
    %125 = tpu.matmul %124, %3, %cst_32 {dimension_numbers = #tpu.dot_dimension_numbers<[1], [0], [0], [1], [0, 0, 1, 1], [], []>} : vector<2x128xbf16>, vector<128x384xbf16>, vector<2x384xf32> -> vector<2x384xf32>
    %126 = vector.extract_strided_slice %123 {offsets = [0, 0], sizes = [2, 128], strides = [1, 1]} : vector<2x384xf32> to vector<2x128xf32>
    %127 = vector.extract_strided_slice %125 {offsets = [0, 0], sizes = [2, 128], strides = [1, 1]} : vector<2x384xf32> to vector<2x128xf32>
    %128 = arith.addf %126, %127 : vector<2x128xf32>
    %129 = arith.negf %128 : vector<2x128xf32>
    %130 = math.exp %129 : vector<2x128xf32>
    %cst_33 = arith.constant 1.000000e+00 : f32
    %131 = vector.broadcast %cst_33 : f32 to vector<2x128xf32>
    %132 = arith.addf %131, %130 : vector<2x128xf32>
    %133 = arith.divf %131, %132 : vector<2x128xf32>
    %134 = vector.extract_strided_slice %123 {offsets = [0, 128], sizes = [2, 128], strides = [1, 1]} : vector<2x384xf32> to vector<2x128xf32>
    %135 = vector.extract_strided_slice %125 {offsets = [0, 128], sizes = [2, 128], strides = [1, 1]} : vector<2x384xf32> to vector<2x128xf32>
    %136 = arith.addf %134, %135 : vector<2x128xf32>
    %137 = arith.negf %136 : vector<2x128xf32>
    %138 = math.exp %137 : vector<2x128xf32>
    %cst_34 = arith.constant 1.000000e+00 : f32
    %139 = vector.broadcast %cst_34 : f32 to vector<2x128xf32>
    %140 = arith.addf %139, %138 : vector<2x128xf32>
    %141 = arith.divf %139, %140 : vector<2x128xf32>
    %142 = vector.extract_strided_slice %123 {offsets = [0, 256], sizes = [2, 128], strides = [1, 1]} : vector<2x384xf32> to vector<2x128xf32>
    %143 = vector.extract_strided_slice %125 {offsets = [0, 256], sizes = [2, 128], strides = [1, 1]} : vector<2x384xf32> to vector<2x128xf32>
    %144 = vector.broadcast %4 : vector<1x128xf32> to vector<2x128xf32>
    %145 = arith.addf %143, %144 : vector<2x128xf32>
    %146 = arith.mulf %133, %145 : vector<2x128xf32>
    %147 = arith.addf %142, %146 : vector<2x128xf32>
    %148 = math.tanh %147 : vector<2x128xf32>
    %cst_35 = arith.constant 1.000000e+00 : f32
    %149 = vector.broadcast %cst_35 : f32 to vector<2x128xf32>
    %150 = arith.subf %149, %141 : vector<2x128xf32>
    %151 = arith.mulf %150, %148 : vector<2x128xf32>
    %152 = arith.mulf %141, %115 : vector<2x128xf32>
    %153 = arith.addf %151, %152 : vector<2x128xf32>
    %154 = arith.index_cast %c3_i32 : i32 to index
    %c0_36 = arith.constant 0 : index
    %c0_37 = arith.constant 0 : index
    %155 = vector.load %arg4[%154, %c0_36, %c0_37] : memref<8x2x128xf32, #tpu.memory_space<vmem>>, vector<1x2x128xf32>
    %156 = vector.shape_cast %155 : vector<1x2x128xf32> to vector<2x128xf32>
    %157 = vector.shape_cast %153 : vector<2x128xf32> to vector<1x2x128xf32>
    tpu.vector_store %arg4[%154, %c0_36, %c0_37], %157 {strides = array<i32>} : memref<8x2x128xf32, #tpu.memory_space<vmem>>, vector<1x2x128xf32>,
    %c4_i32 = arith.constant 4 : i32
    %158 = arith.index_cast %c4_i32 : i32 to index
    %c0_38 = arith.constant 0 : index
    %c0_39 = arith.constant 0 : index
    %159 = vector.load %arg1[%158, %c0_38, %c0_39] : memref<8x2x384xbf16, #tpu.memory_space<vmem>>, vector<1x2x384xbf16>
    %160 = vector.shape_cast %159 : vector<1x2x384xbf16> to vector<2x384xbf16>
    %161 = arith.extf %160 : vector<2x384xbf16> to vector<2x384xf32>
    %162 = arith.truncf %153 : vector<2x128xf32> to vector<2x128xbf16>
    %cst_40 = arith.constant dense<0.000000e+00> : vector<2x384xf32>
    %163 = tpu.matmul %162, %3, %cst_40 {dimension_numbers = #tpu.dot_dimension_numbers<[1], [0], [0], [1], [0, 0, 1, 1], [], []>} : vector<2x128xbf16>, vector<128x384xbf16>, vector<2x384xf32> -> vector<2x384xf32>
    %164 = vector.extract_strided_slice %161 {offsets = [0, 0], sizes = [2, 128], strides = [1, 1]} : vector<2x384xf32> to vector<2x128xf32>
    %165 = vector.extract_strided_slice %163 {offsets = [0, 0], sizes = [2, 128], strides = [1, 1]} : vector<2x384xf32> to vector<2x128xf32>
    %166 = arith.addf %164, %165 : vector<2x128xf32>
    %167 = arith.negf %166 : vector<2x128xf32>
    %168 = math.exp %167 : vector<2x128xf32>
    %cst_41 = arith.constant 1.000000e+00 : f32
    %169 = vector.broadcast %cst_41 : f32 to vector<2x128xf32>
    %170 = arith.addf %169, %168 : vector<2x128xf32>
    %171 = arith.divf %169, %170 : vector<2x128xf32>
    %172 = vector.extract_strided_slice %161 {offsets = [0, 128], sizes = [2, 128], strides = [1, 1]} : vector<2x384xf32> to vector<2x128xf32>
    %173 = vector.extract_strided_slice %163 {offsets = [0, 128], sizes = [2, 128], strides = [1, 1]} : vector<2x384xf32> to vector<2x128xf32>
    %174 = arith.addf %172, %173 : vector<2x128xf32>
    %175 = arith.negf %174 : vector<2x128xf32>
    %176 = math.exp %175 : vector<2x128xf32>
    %cst_42 = arith.constant 1.000000e+00 : f32
    %177 = vector.broadcast %cst_42 : f32 to vector<2x128xf32>
    %178 = arith.addf %177, %176 : vector<2x128xf32>
    %179 = arith.divf %177, %178 : vector<2x128xf32>
    %180 = vector.extract_strided_slice %161 {offsets = [0, 256], sizes = [2, 128], strides = [1, 1]} : vector<2x384xf32> to vector<2x128xf32>
    %181 = vector.extract_strided_slice %163 {offsets = [0, 256], sizes = [2, 128], strides = [1, 1]} : vector<2x384xf32> to vector<2x128xf32>
    %182 = vector.broadcast %4 : vector<1x128xf32> to vector<2x128xf32>
    %183 = arith.addf %181, %182 : vector<2x128xf32>
    %184 = arith.mulf %171, %183 : vector<2x128xf32>
    %185 = arith.addf %180, %184 : vector<2x128xf32>
    %186 = math.tanh %185 : vector<2x128xf32>
    %cst_43 = arith.constant 1.000000e+00 : f32
    %187 = vector.broadcast %cst_43 : f32 to vector<2x128xf32>
    %188 = arith.subf %187, %179 : vector<2x128xf32>
    %189 = arith.mulf %188, %186 : vector<2x128xf32>
    %190 = arith.mulf %179, %153 : vector<2x128xf32>
    %191 = arith.addf %189, %190 : vector<2x128xf32>
    %192 = arith.index_cast %c4_i32 : i32 to index
    %c0_44 = arith.constant 0 : index
    %c0_45 = arith.constant 0 : index
    %193 = vector.load %arg4[%192, %c0_44, %c0_45] : memref<8x2x128xf32, #tpu.memory_space<vmem>>, vector<1x2x128xf32>
    %194 = vector.shape_cast %193 : vector<1x2x128xf32> to vector<2x128xf32>
    %195 = vector.shape_cast %191 : vector<2x128xf32> to vector<1x2x128xf32>
    tpu.vector_store %arg4[%192, %c0_44, %c0_45], %195 {strides = array<i32>} : memref<8x2x128xf32, #tpu.memory_space<vmem>>, vector<1x2x128xf32>,
    %c5_i32 = arith.constant 5 : i32
    %196 = arith.index_cast %c5_i32 : i32 to index
    %c0_46 = arith.constant 0 : index
    %c0_47 = arith.constant 0 : index
    %197 = vector.load %arg1[%196, %c0_46, %c0_47] : memref<8x2x384xbf16, #tpu.memory_space<vmem>>, vector<1x2x384xbf16>
    %198 = vector.shape_cast %197 : vector<1x2x384xbf16> to vector<2x384xbf16>
    %199 = arith.extf %198 : vector<2x384xbf16> to vector<2x384xf32>
    %200 = arith.truncf %191 : vector<2x128xf32> to vector<2x128xbf16>
    %cst_48 = arith.constant dense<0.000000e+00> : vector<2x384xf32>
    %201 = tpu.matmul %200, %3, %cst_48 {dimension_numbers = #tpu.dot_dimension_numbers<[1], [0], [0], [1], [0, 0, 1, 1], [], []>} : vector<2x128xbf16>, vector<128x384xbf16>, vector<2x384xf32> -> vector<2x384xf32>
    %202 = vector.extract_strided_slice %199 {offsets = [0, 0], sizes = [2, 128], strides = [1, 1]} : vector<2x384xf32> to vector<2x128xf32>
    %203 = vector.extract_strided_slice %201 {offsets = [0, 0], sizes = [2, 128], strides = [1, 1]} : vector<2x384xf32> to vector<2x128xf32>
    %204 = arith.addf %202, %203 : vector<2x128xf32>
    %205 = arith.negf %204 : vector<2x128xf32>
    %206 = math.exp %205 : vector<2x128xf32>
    %cst_49 = arith.constant 1.000000e+00 : f32
    %207 = vector.broadcast %cst_49 : f32 to vector<2x128xf32>
    %208 = arith.addf %207, %206 : vector<2x128xf32>
    %209 = arith.divf %207, %208 : vector<2x128xf32>
    %210 = vector.extract_strided_slice %199 {offsets = [0, 128], sizes = [2, 128], strides = [1, 1]} : vector<2x384xf32> to vector<2x128xf32>
    %211 = vector.extract_strided_slice %201 {offsets = [0, 128], sizes = [2, 128], strides = [1, 1]} : vector<2x384xf32> to vector<2x128xf32>
    %212 = arith.addf %210, %211 : vector<2x128xf32>
    %213 = arith.negf %212 : vector<2x128xf32>
    %214 = math.exp %213 : vector<2x128xf32>
    %cst_50 = arith.constant 1.000000e+00 : f32
    %215 = vector.broadcast %cst_50 : f32 to vector<2x128xf32>
    %216 = arith.addf %215, %214 : vector<2x128xf32>
    %217 = arith.divf %215, %216 : vector<2x128xf32>
    %218 = vector.extract_strided_slice %199 {offsets = [0, 256], sizes = [2, 128], strides = [1, 1]} : vector<2x384xf32> to vector<2x128xf32>
    %219 = vector.extract_strided_slice %201 {offsets = [0, 256], sizes = [2, 128], strides = [1, 1]} : vector<2x384xf32> to vector<2x128xf32>
    %220 = vector.broadcast %4 : vector<1x128xf32> to vector<2x128xf32>
    %221 = arith.addf %219, %220 : vector<2x128xf32>
    %222 = arith.mulf %209, %221 : vector<2x128xf32>
    %223 = arith.addf %218, %222 : vector<2x128xf32>
    %224 = math.tanh %223 : vector<2x128xf32>
    %cst_51 = arith.constant 1.000000e+00 : f32
    %225 = vector.broadcast %cst_51 : f32 to vector<2x128xf32>
    %226 = arith.subf %225, %217 : vector<2x128xf32>
    %227 = arith.mulf %226, %224 : vector<2x128xf32>
    %228 = arith.mulf %217, %191 : vector<2x128xf32>
    %229 = arith.addf %227, %228 : vector<2x128xf32>
    %230 = arith.index_cast %c5_i32 : i32 to index
    %c0_52 = arith.constant 0 : index
    %c0_53 = arith.constant 0 : index
    %231 = vector.load %arg4[%230, %c0_52, %c0_53] : memref<8x2x128xf32, #tpu.memory_space<vmem>>, vector<1x2x128xf32>
    %232 = vector.shape_cast %231 : vector<1x2x128xf32> to vector<2x128xf32>
    %233 = vector.shape_cast %229 : vector<2x128xf32> to vector<1x2x128xf32>
    tpu.vector_store %arg4[%230, %c0_52, %c0_53], %233 {strides = array<i32>} : memref<8x2x128xf32, #tpu.memory_space<vmem>>, vector<1x2x128xf32>,
    %c6_i32 = arith.constant 6 : i32
    %234 = arith.index_cast %c6_i32 : i32 to index
    %c0_54 = arith.constant 0 : index
    %c0_55 = arith.constant 0 : index
    %235 = vector.load %arg1[%234, %c0_54, %c0_55] : memref<8x2x384xbf16, #tpu.memory_space<vmem>>, vector<1x2x384xbf16>
    %236 = vector.shape_cast %235 : vector<1x2x384xbf16> to vector<2x384xbf16>
    %237 = arith.extf %236 : vector<2x384xbf16> to vector<2x384xf32>
    %238 = arith.truncf %229 : vector<2x128xf32> to vector<2x128xbf16>
    %cst_56 = arith.constant dense<0.000000e+00> : vector<2x384xf32>
    %239 = tpu.matmul %238, %3, %cst_56 {dimension_numbers = #tpu.dot_dimension_numbers<[1], [0], [0], [1], [0, 0, 1, 1], [], []>} : vector<2x128xbf16>, vector<128x384xbf16>, vector<2x384xf32> -> vector<2x384xf32>
    %240 = vector.extract_strided_slice %237 {offsets = [0, 0], sizes = [2, 128], strides = [1, 1]} : vector<2x384xf32> to vector<2x128xf32>
    %241 = vector.extract_strided_slice %239 {offsets = [0, 0], sizes = [2, 128], strides = [1, 1]} : vector<2x384xf32> to vector<2x128xf32>
    %242 = arith.addf %240, %241 : vector<2x128xf32>
    %243 = arith.negf %242 : vector<2x128xf32>
    %244 = math.exp %243 : vector<2x128xf32>
    %cst_57 = arith.constant 1.000000e+00 : f32
    %245 = vector.broadcast %cst_57 : f32 to vector<2x128xf32>
    %246 = arith.addf %245, %244 : vector<2x128xf32>
    %247 = arith.divf %245, %246 : vector<2x128xf32>
    %248 = vector.extract_strided_slice %237 {offsets = [0, 128], sizes = [2, 128], strides = [1, 1]} : vector<2x384xf32> to vector<2x128xf32>
    %249 = vector.extract_strided_slice %239 {offsets = [0, 128], sizes = [2, 128], strides = [1, 1]} : vector<2x384xf32> to vector<2x128xf32>
    %250 = arith.addf %248, %249 : vector<2x128xf32>
    %251 = arith.negf %250 : vector<2x128xf32>
    %252 = math.exp %251 : vector<2x128xf32>
    %cst_58 = arith.constant 1.000000e+00 : f32
    %253 = vector.broadcast %cst_58 : f32 to vector<2x128xf32>
    %254 = arith.addf %253, %252 : vector<2x128xf32>
    %255 = arith.divf %253, %254 : vector<2x128xf32>
    %256 = vector.extract_strided_slice %237 {offsets = [0, 256], sizes = [2, 128], strides = [1, 1]} : vector<2x384xf32> to vector<2x128xf32>
    %257 = vector.extract_strided_slice %239 {offsets = [0, 256], sizes = [2, 128], strides = [1, 1]} : vector<2x384xf32> to vector<2x128xf32>
    %258 = vector.broadcast %4 : vector<1x128xf32> to vector<2x128xf32>
    %259 = arith.addf %257, %258 : vector<2x128xf32>
    %260 = arith.mulf %247, %259 : vector<2x128xf32>
    %261 = arith.addf %256, %260 : vector<2x128xf32>
    %262 = math.tanh %261 : vector<2x128xf32>
    %cst_59 = arith.constant 1.000000e+00 : f32
    %263 = vector.broadcast %cst_59 : f32 to vector<2x128xf32>
    %264 = arith.subf %263, %255 : vector<2x128xf32>
    %265 = arith.mulf %264, %262 : vector<2x128xf32>
    %266 = arith.mulf %255, %229 : vector<2x128xf32>
    %267 = arith.addf %265, %266 : vector<2x128xf32>
    %268 = arith.index_cast %c6_i32 : i32 to index
    %c0_60 = arith.constant 0 : index
    %c0_61 = arith.constant 0 : index
    %269 = vector.load %arg4[%268, %c0_60, %c0_61] : memref<8x2x128xf32, #tpu.memory_space<vmem>>, vector<1x2x128xf32>
    %270 = vector.shape_cast %269 : vector<1x2x128xf32> to vector<2x128xf32>
    %271 = vector.shape_cast %267 : vector<2x128xf32> to vector<1x2x128xf32>
    tpu.vector_store %arg4[%268, %c0_60, %c0_61], %271 {strides = array<i32>} : memref<8x2x128xf32, #tpu.memory_space<vmem>>, vector<1x2x128xf32>,
    %c7_i32 = arith.constant 7 : i32
    %272 = arith.index_cast %c7_i32 : i32 to index
    %c0_62 = arith.constant 0 : index
    %c0_63 = arith.constant 0 : index
    %273 = vector.load %arg1[%272, %c0_62, %c0_63] : memref<8x2x384xbf16, #tpu.memory_space<vmem>>, vector<1x2x384xbf16>
    %274 = vector.shape_cast %273 : vector<1x2x384xbf16> to vector<2x384xbf16>
    %275 = arith.extf %274 : vector<2x384xbf16> to vector<2x384xf32>
    %276 = arith.truncf %267 : vector<2x128xf32> to vector<2x128xbf16>
    %cst_64 = arith.constant dense<0.000000e+00> : vector<2x384xf32>
    %277 = tpu.matmul %276, %3, %cst_64 {dimension_numbers = #tpu.dot_dimension_numbers<[1], [0], [0], [1], [0, 0, 1, 1], [], []>} : vector<2x128xbf16>, vector<128x384xbf16>, vector<2x384xf32> -> vector<2x384xf32>
    %278 = vector.extract_strided_slice %275 {offsets = [0, 0], sizes = [2, 128], strides = [1, 1]} : vector<2x384xf32> to vector<2x128xf32>
    %279 = vector.extract_strided_slice %277 {offsets = [0, 0], sizes = [2, 128], strides = [1, 1]} : vector<2x384xf32> to vector<2x128xf32>
    %280 = arith.addf %278, %279 : vector<2x128xf32>
    %281 = arith.negf %280 : vector<2x128xf32>
    %282 = math.exp %281 : vector<2x128xf32>
    %cst_65 = arith.constant 1.000000e+00 : f32
    %283 = vector.broadcast %cst_65 : f32 to vector<2x128xf32>
    %284 = arith.addf %283, %282 : vector<2x128xf32>
    %285 = arith.divf %283, %284 : vector<2x128xf32>
    %286 = vector.extract_strided_slice %275 {offsets = [0, 128], sizes = [2, 128], strides = [1, 1]} : vector<2x384xf32> to vector<2x128xf32>
    %287 = vector.extract_strided_slice %277 {offsets = [0, 128], sizes = [2, 128], strides = [1, 1]} : vector<2x384xf32> to vector<2x128xf32>
    %288 = arith.addf %286, %287 : vector<2x128xf32>
    %289 = arith.negf %288 : vector<2x128xf32>
    %290 = math.exp %289 : vector<2x128xf32>
    %cst_66 = arith.constant 1.000000e+00 : f32
    %291 = vector.broadcast %cst_66 : f32 to vector<2x128xf32>
    %292 = arith.addf %291, %290 : vector<2x128xf32>
    %293 = arith.divf %291, %292 : vector<2x128xf32>
    %294 = vector.extract_strided_slice %275 {offsets = [0, 256], sizes = [2, 128], strides = [1, 1]} : vector<2x384xf32> to vector<2x128xf32>
    %295 = vector.extract_strided_slice %277 {offsets = [0, 256], sizes = [2, 128], strides = [1, 1]} : vector<2x384xf32> to vector<2x128xf32>
    %296 = vector.broadcast %4 : vector<1x128xf32> to vector<2x128xf32>
    %297 = arith.addf %295, %296 : vector<2x128xf32>
    %298 = arith.mulf %285, %297 : vector<2x128xf32>
    %299 = arith.addf %294, %298 : vector<2x128xf32>
    %300 = math.tanh %299 : vector<2x128xf32>
    %cst_67 = arith.constant 1.000000e+00 : f32
    %301 = vector.broadcast %cst_67 : f32 to vector<2x128xf32>
    %302 = arith.subf %301, %293 : vector<2x128xf32>
    %303 = arith.mulf %302, %300 : vector<2x128xf32>
    %304 = arith.mulf %293, %267 : vector<2x128xf32>
    %305 = arith.addf %303, %304 : vector<2x128xf32>
    %306 = arith.index_cast %c7_i32 : i32 to index
    %c0_68 = arith.constant 0 : index
    %c0_69 = arith.constant 0 : index
    %307 = vector.load %arg4[%306, %c0_68, %c0_69] : memref<8x2x128xf32, #tpu.memory_space<vmem>>, vector<1x2x128xf32>
    %308 = vector.shape_cast %307 : vector<1x2x128xf32> to vector<2x128xf32>
    %309 = vector.shape_cast %305 : vector<2x128xf32> to vector<1x2x128xf32>
    tpu.vector_store %arg4[%306, %c0_68, %c0_69], %309 {strides = array<i32>} : memref<8x2x128xf32, #tpu.memory_space<vmem>>, vector<1x2x128xf32>,
    %c8_i32 = arith.constant 8 : i32
    %c0_70 = arith.constant 0 : index
    %c0_71 = arith.constant 0 : index
    %310 = vector.load %arg5[%c0_70, %c0_71] : memref<2x128xf32, #tpu.memory_space<vmem>>, vector<2x128xf32>
    tpu.vector_store %arg5[%c0_70, %c0_71], %305 {strides = array<i32>} : memref<2x128xf32, #tpu.memory_space<vmem>>, vector<2x128xf32>,
    return
  }
  func.func @transform_0(%arg0: i32) -> (i32, i32, i32) {
    %c0_i32 = arith.constant 0 : i32
    %c0_i32_0 = arith.constant 0 : i32
    %c0_i32_1 = arith.constant 0 : i32
    return %arg0, %c0_i32, %c0_i32_0 : i32, i32, i32
  }
  func.func @transform_1(%arg0: i32) -> (i32, i32) {
    %c0_i32 = arith.constant 0 : i32
    %c0_i32_0 = arith.constant 0 : i32
    %c0_i32_1 = arith.constant 0 : i32
    return %c0_i32, %c0_i32_0 : i32, i32
  }
  func.func @transform_2(%arg0: i32) -> (i32, i32) {
    %c0_i32 = arith.constant 0 : i32
    %c0_i32_0 = arith.constant 0 : i32
    %c0_i32_1 = arith.constant 0 : i32
    return %c0_i32, %c0_i32_0 : i32, i32
  }
  func.func @transform_3(%arg0: i32) -> (i32, i32, i32) {
    %c0_i32 = arith.constant 0 : i32
    %c0_i32_0 = arith.constant 0 : i32
    %c0_i32_1 = arith.constant 0 : i32
    return %arg0, %c0_i32, %c0_i32_0 : i32, i32, i32
  }
}

</mosaic_0001>

<llo_original>
// kernel: tpu_custom_call.1
$region0: #{tpu_custom_call.1}
  #allocation0 [shape = 'u32[]', space=smem, size = 0x4, offset = 0x4, fixed_abs, tag = 'smem constant byte address 0x4 - core index']
  #allocation1 [shape = 'u32[72,128]{1,0:T(1,128)}', space=vmem, size = 0x9000, scoped, tag = 'internal scratch']
  #allocation2 [shape = 'f32[2,128]{1,0:T(2,128)}', space=vmem, size = 0x400, scoped, tag = 'scratch operand']
  %s0 = inlined_call_operand.hbm [shape: bf16[8,2,384], index: 0, kind: input, shape index: {}]
  %s1 = inlined_call_operand.hbm [shape: bf16[128,384], index: 1, kind: input, shape index: {}]
  %s2 = inlined_call_operand.vmem [shape: f32[1,128], index: 2, kind: input, shape index: {}]
  %s3 = inlined_call_operand.hbm [shape: f32[8,2,128], index: 3, kind: output, shape index: {}]
  %s4 = sld [smem:[#allocation0]]
  $region34: #{tpu_custom_call.1} parent=0
    _
  %s6 = ssub.s32 1, %s4
  %s7 = scalar_select 0, %s6, %s4
  $region1: #{tpu_custom_call.1} parent=0
    #allocation3 [shape = 'u8[12288]{0}', space=vmem, size = 0x3000, scoped, tag = 'input window, operand 0, single buffered']
    #allocation4 [shape = 's32[1]{0}', space=sflag, size = 0x4, scoped, tag = 'scoped memory for tpu_custom_call.1']
    #allocation5 [shape = 's32[1]{0}', space=sflag, size = 0x4, scoped, tag = 'scoped memory for tpu_custom_call.1']
    #allocation6 [shape = 'u8[98304]{0}', space=vmem, size = 0x18000, scoped, tag = 'input window, operand 1, single buffered']
    #allocation7 [shape = 's32[1]{0}', space=sflag, size = 0x4, scoped, tag = 'scoped memory for tpu_custom_call.1']
    #allocation8 [shape = 'u8[8192]{0}', space=vmem, size = 0x2000, scoped, tag = 'output window, operand 0, single buffered']
    %8 = vsyncpa [#allocation4], 0
    %9 = vsyncpa [#allocation7], 0
    %10 = vsyncpa [#allocation5], 0
    // Predicated region
    $region2: #{tpu_custom_call.1} parent=1 // pred_check
      _
    $region3: #{tpu_custom_call.1} parent=1 // pred_check_branch
      %12 = sbr.rel (0) target = $region5
    $region4: #{tpu_custom_call.1} parent=1 // pred_region
      %14 = vsyncadd [#allocation4], 0
      %s15 = sshll.u32 %s0, 4
      %s16 = int_to_ptr.hbm [resolvable:$true] %s15
      %s17 = sshll.u32 [#allocation3], 4
      %s18 = int_to_ptr.vmem [resolvable:$true] %s17
      %23 = dma.hbm_to_vmem [thread:$0]  %s16, 384, %s18, [#allocation4], 48, 48, 3
    $region5: #{tpu_custom_call.1} parent=1 // pred_fallthru
      _
    // Predicated region
    $region6: #{tpu_custom_call.1} parent=1 // pred_check
      _
    $region7: #{tpu_custom_call.1} parent=1 // pred_check_branch
      %25 = sbr.rel (0) target = $region9
    $region8: #{tpu_custom_call.1} parent=1 // pred_region
      %27 = vsyncadd [#allocation7], 0
      %s28 = sshll.u32 %s1, 4
      %s29 = int_to_ptr.hbm [resolvable:$true] %s28
      %s30 = sshll.u32 [#allocation6], 4
      %s31 = int_to_ptr.vmem [resolvable:$true] %s30
      %36 = dma.hbm_to_vmem [thread:$0]  %s29, 3072, %s31, [#allocation7], 192, 192, 12
    $region9: #{tpu_custom_call.1} parent=1 // pred_fallthru
      _
    // Predicated region
    $region10: #{tpu_custom_call.1} parent=1 // pred_check
      _
    $region11: #{tpu_custom_call.1} parent=1 // pred_check_branch
      %38 = sbr.rel (0) target = $region13
    $region12: #{tpu_custom_call.1} parent=1 // pred_region
      _
    $region13: #{tpu_custom_call.1} parent=1 // pred_fallthru
      _
    // Predicated region
    $region14: #{tpu_custom_call.1} parent=1 // pred_check
      _
    $region15: #{tpu_custom_call.1} parent=1 // pred_check_branch
      %40 = sbr.rel (0) target = $region17
    $region16: #{tpu_custom_call.1} parent=1 // pred_region
      %42 = dma.done [#allocation4], 384
    $region17: #{tpu_custom_call.1} parent=1 // pred_fallthru
      _
    // Predicated region
    $region18: #{tpu_custom_call.1} parent=1 // pred_check
      _
    $region19: #{tpu_custom_call.1} parent=1 // pred_check_branch
      %44 = sbr.rel (0) target = $region21
    $region20: #{tpu_custom_call.1} parent=1 // pred_region
      %46 = dma.done [#allocation7], 3072
    $region21: #{tpu_custom_call.1} parent=1 // pred_fallthru
      _
    %p47 = scmp.eq.s32.totalorder 0, 0
    // Predicated region
    $region22: #{tpu_custom_call.1} parent=1 // pred_check
      %p48 = pneg %p47
    $region23: #{tpu_custom_call.1} parent=1 // pred_check_branch
      %50 = sbr.rel (%p48) target = $region25
    $region24: #{tpu_custom_call.1} parent=1 // pred_region
      %51 = vst [vmem:[#allocation2] sm:$0x3] 0.0
    $region25: #{tpu_custom_call.1} parent=1 // pred_fallthru
      _
    %v52 = vld [vmem:[#allocation6] sm:$0xff]
    %v53 = vld [vmem:[#allocation6 + $0x8] sm:$0xf]
    %v54 = vld [vmem:[#allocation6 + $0xc] sm:$0xff]
    %v55 = vld [vmem:[#allocation6 + $0x14] sm:$0xf]
    %v56 = vld [vmem:[#allocation6 + $0x18] sm:$0xff]
    %v57 = vld [vmem:[#allocation6 + $0x20] sm:$0xf]
    %v58 = vld [vmem:[#allocation6 + $0x24] sm:$0xff]
    %v59 = vld [vmem:[#allocation6 + $0x2c] sm:$0xf]
    %v60 = vld [vmem:[#allocation6 + $0x30] sm:$0xff]
    %v61 = vld [vmem:[#allocation6 + $0x38] sm:$0xf]
    %v62 = vld [vmem:[#allocation6 + $0x3c] sm:$0xff]
    %v63 = vld [vmem:[#allocation6 + $0x44] sm:$0xf]
    %v64 = vld [vmem:[#allocation6 + $0x48] sm:$0xff]
    %v65 = vld [vmem:[#allocation6 + $0x50] sm:$0xf]
    %v66 = vld [vmem:[#allocation6 + $0x54] sm:$0xff]
    %v67 = vld [vmem:[#allocation6 + $0x5c] sm:$0xf]
    %v68 = vld [vmem:[#allocation6 + $0x60] sm:$0xff]
    %v69 = vld [vmem:[#allocation6 + $0x68] sm:$0xf]
    %v70 = vld [vmem:[#allocation6 + $0x6c] sm:$0xff]
    %v71 = vld [vmem:[#allocation6 + $0x74] sm:$0xf]
    %v72 = vld [vmem:[#allocation6 + $0x78] sm:$0xff]
    %v73 = vld [vmem:[#allocation6 + $0x80] sm:$0xf]
    %v74 = vld [vmem:[#allocation6 + $0x84] sm:$0xff]
    %v75 = vld [vmem:[#allocation6 + $0x8c] sm:$0xf]
    %v76 = vld [vmem:[#allocation6 + $0x90] sm:$0xff]
    %v77 = vld [vmem:[#allocation6 + $0x98] sm:$0xf]
    %v78 = vld [vmem:[#allocation6 + $0x9c] sm:$0xff]
    %v79 = vld [vmem:[#allocation6 + $0xa4] sm:$0xf]
    %v80 = vld [vmem:[#allocation6 + $0xa8] sm:$0xff]
    %v81 = vld [vmem:[#allocation6 + $0xb0] sm:$0xf]
    %v82 = vld [vmem:[#allocation6 + $0xb4] sm:$0xff]
    %v83 = vld [vmem:[#allocation6 + $0xbc] sm:$0xf]
    %v84 = vld [vmem:[%s2] sm:$0x1]
    %v85 = vld [vmem:[#allocation2] sm:$0x3]
    %v86 = vld [vmem:[#allocation3] sm:$0x7]
    %v87 = vunpack.c.l.bf16 %v86
    %v88 = vpack.c.bf16 %v85, %v85
    %v121 = vunpack.c.l.b16 %v52
    %v122 = vunpack.c.h.b16 %v52
    %v123 = vunpack.c.l.b16 %v53
    %v124 = vunpack.c.l.b16 %v54
    %v125 = vunpack.c.h.b16 %v54
    %v126 = vunpack.c.l.b16 %v55
    %v127 = vunpack.c.l.b16 %v56
    %v128 = vunpack.c.h.b16 %v56
    %v129 = vunpack.c.l.b16 %v57
    %v130 = vunpack.c.l.b16 %v58
    %v131 = vunpack.c.h.b16 %v58
    %v132 = vunpack.c.l.b16 %v59
    %v133 = vunpack.c.l.b16 %v60
    %v134 = vunpack.c.h.b16 %v60
    %v135 = vunpack.c.l.b16 %v61
    %v136 = vunpack.c.l.b16 %v62
    %v137 = vunpack.c.h.b16 %v62
    %v138 = vunpack.c.l.b16 %v63
    %v139 = vunpack.c.l.b16 %v64
    %v140 = vunpack.c.h.b16 %v64
    %v141 = vunpack.c.l.b16 %v65
    %v142 = vunpack.c.l.b16 %v66
    %v143 = vunpack.c.h.b16 %v66
    %v144 = vunpack.c.l.b16 %v67
    %v145 = vunpack.c.l.b16 %v68
    %v146 = vunpack.c.h.b16 %v68
    %v147 = vunpack.c.l.b16 %v69
    %v148 = vunpack.c.l.b16 %v70
    %v149 = vunpack.c.h.b16 %v70
    %v150 = vunpack.c.l.b16 %v71
    %v151 = vunpack.c.l.b16 %v72
    %v152 = vunpack.c.h.b16 %v72
    %v153 = vunpack.c.l.b16 %v73
    %v154 = vunpack.c.l.b16 %v74
    %v155 = vunpack.c.h.b16 %v74
    %v156 = vunpack.c.l.b16 %v75
    %v157 = vunpack.c.l.b16 %v76
    %v158 = vunpack.c.h.b16 %v76
    %v159 = vunpack.c.l.b16 %v77
    %v160 = vunpack.c.l.b16 %v78
    %v161 = vunpack.c.h.b16 %v78
    %v162 = vunpack.c.l.b16 %v79
    %v163 = vunpack.c.l.b16 %v80
    %v164 = vunpack.c.h.b16 %v80
    %v165 = vunpack.c.l.b16 %v81
    %v166 = vunpack.c.l.b16 %v82
    %v167 = vunpack.c.h.b16 %v82
    %v168 = vunpack.c.l.b16 %v83
    %v169 = vpack.c.b16 %v124, %v121
    %v170 = vpack.c.b16 %v125, %v122
    %v171 = vpack.c.b16 %v126, %v123
    %v172 = vpack.c.b16 %v130, %v127
    %v173 = vpack.c.b16 %v131, %v128
    %v174 = vpack.c.b16 %v132, %v129
    %v175 = vpack.c.b16 %v136, %v133
    %v176 = vpack.c.b16 %v137, %v134
    %v177 = vpack.c.b16 %v138, %v135
    %v178 = vpack.c.b16 %v142, %v139
    %v179 = vpack.c.b16 %v143, %v140
    %v180 = vpack.c.b16 %v144, %v141
    %v181 = vpack.c.b16 %v148, %v145
    %v182 = vpack.c.b16 %v149, %v146
    %v183 = vpack.c.b16 %v150, %v147
    %v184 = vpack.c.b16 %v154, %v151
    %v185 = vpack.c.b16 %v155, %v152
    %v186 = vpack.c.b16 %v156, %v153
    %v187 = vpack.c.b16 %v160, %v157
    %v188 = vpack.c.b16 %v161, %v158
    %v189 = vpack.c.b16 %v162, %v159
    %v190 = vpack.c.b16 %v166, %v163
    %v191 = vpack.c.b16 %v167, %v164
    %v192 = vpack.c.b16 %v168, %v165
    %217 = vmatpush.bf16.msra.mxu0 %v190
    %218 = vmatpush.bf16.msra.mxu0 %v187
    %219 = vmatpush.bf16.msra.mxu0 %v184
    %220 = vmatpush.bf16.msra.mxu0 %v181
    %221 = vmatpush.bf16.msra.mxu0 %v178
    %222 = vmatpush.bf16.msra.mxu0 %v175
    %223 = vmatpush.bf16.msra.mxu0 %v172
    %224 = vmatpush.bf16.msra.mxu0 %v169
    %225 = vmatmul.bf16.gmra.mxu0 %v88
    %v226 = vpop.f32.mrf.mxu0
    %v227 = vadd.f32 0.0, %v226
    %v228 = vpop.f32.mrf.mxu0
    %229 = vdwg.mxu0
    %230 = vmatpush.bf16.msra.mxu0 %v191
    %231 = vmatpush.bf16.msra.mxu0 %v188
    %232 = vmatpush.bf16.msra.mxu0 %v185
    %233 = vmatpush.bf16.msra.mxu0 %v182
    %234 = vmatpush.bf16.msra.mxu0 %v179
    %235 = vmatpush.bf16.msra.mxu0 %v176
    %236 = vmatpush.bf16.msra.mxu0 %v173
    %237 = vmatpush.bf16.msra.mxu0 %v170
    %238 = vmatmul.bf16.gmra.mxu0 %v88
    %v239 = vpop.f32.mrf.mxu0
    %v240 = vadd.f32 0.0, %v239
    %v241 = vpop.f32.mrf.mxu0
    %242 = vdwg.mxu0
    %243 = vmatpush.bf16.msra.mxu0 %v192
    %244 = vmatpush.bf16.msra.mxu0 %v189
    %245 = vmatpush.bf16.msra.mxu0 %v186
    %246 = vmatpush.bf16.msra.mxu0 %v183
    %247 = vmatpush.bf16.msra.mxu0 %v180
    %248 = vmatpush.bf16.msra.mxu0 %v177
    %249 = vmatpush.bf16.msra.mxu0 %v174
    %250 = vmatpush.bf16.msra.mxu0 %v171
    %251 = vmatmul.bf16.gmra.mxu0 %v88
    %v252 = vpop.f32.mrf.mxu0
    %v253 = vadd.f32 0.0, %v252
    %v254 = vpop.f32.mrf.mxu0
    %255 = vdwg.mxu0
    %v256 = vadd.f32 %v87, %v227
    %v257 = vxor.u32 %v256, 2147483648
    %v258 = vmul.f32 %v257, 1.442695
    %v259 = vpow.pop %v258
    %v260 = vadd.f32 %v259, 1.0
    %v261 = vrcp.pop %v260
    %v262 = vmul.f32 %v260, %v261
    %v263 = vsub.f32 1.0, %v262
    %v264 = vmul.f32 %v261, %v263
    %v265 = vadd.f32 %v261, %v264
    %vm266 = vweird.f32 %v260
    %vm267 = vweird.f32 %v261
    %vm268 = vmor %vm266, %vm267
    %v269 = vsel %vm268, %v261, %v265
    %v270 = vand.u32 2147483647, %v260
    %vm271 = vcmp.eq.f32.partialorder %v270, 8.507059e+37
    %v272 = vand.u32 %v260, 2147483648
    %v273 = vor.u32 1.1754944e-38, %v272
    %v274 = vsel %vm271, %v273, %v269
    %v275 = vmul.f32 1.0, %v274
    %v277 = vrot.slane %v87, 2
    %v279 = vadd.f32 %v277, %v240
    %v280 = vxor.u32 %v279, 2147483648
    %v281 = vmul.f32 %v280, 1.442695
    %v282 = vpow.pop %v281
    %v283 = vadd.f32 %v282, 1.0
    %v284 = vrcp.pop %v283
    %v285 = vmul.f32 %v283, %v284
    %v286 = vsub.f32 1.0, %v285
    %v287 = vmul.f32 %v284, %v286
    %v288 = vadd.f32 %v284, %v287
    %vm289 = vweird.f32 %v283
    %vm290 = vweird.f32 %v284
    %vm291 = vmor %vm289, %vm290
    %v292 = vsel %vm291, %v284, %v288
    %v293 = vand.u32 2147483647, %v283
    %vm294 = vcmp.eq.f32.partialorder %v293, 8.507059e+37
    %v295 = vand.u32 %v283, 2147483648
    %v296 = vor.u32 1.1754944e-38, %v295
    %v297 = vsel %vm294, %v296, %v292
    %v298 = vmul.f32 1.0, %v297
    %v300 = vperm.slane %v84, 0
    %v302 = vadd.f32 %v253, %v300
    %v303 = vmul.f32 %v275, %v302
    %v304 = vrot.slane %v87, 4
    %v306 = vadd.f32 %v304, %v303
    %v307 = vtanh.pop %v306
    %v308 = vsub.f32 1.0, %v298
    %v309 = vmul.f32 %v308, %v307
    %v310 = vmul.f32 %v298, %v85
    %v311 = vadd.f32 %v309, %v310
    %312 = vst [vmem:[#allocation8] sm:$0x3] %v311
    %s313 = scalar_lea.vmem [#allocation3], 3
    %v314 = vld [vmem:[%s313] sm:$0x7]
    %v315 = vunpack.c.l.bf16 %v314
    %v316 = vpack.c.bf16 %v311, %v311
    %317 = vmatpush.bf16.msra.mxu0 %v190
    %318 = vmatpush.bf16.msra.mxu0 %v187
    %319 = vmatpush.bf16.msra.mxu0 %v184
    %320 = vmatpush.bf16.msra.mxu0 %v181
    %321 = vmatpush.bf16.msra.mxu0 %v178
    %322 = vmatpush.bf16.msra.mxu0 %v175
    %323 = vmatpush.bf16.msra.mxu0 %v172
    %324 = vmatpush.bf16.msra.mxu0 %v169
    %325 = vmatmul.bf16.gmra.mxu0 %v316
    %v326 = vpop.f32.mrf.mxu0
    %v327 = vadd.f32 0.0, %v326
    %v328 = vpop.f32.mrf.mxu0
    %329 = vdwg.mxu0
    %330 = vmatpush.bf16.msra.mxu0 %v191
    %331 = vmatpush.bf16.msra.mxu0 %v188
    %332 = vmatpush.bf16.msra.mxu0 %v185
    %333 = vmatpush.bf16.msra.mxu0 %v182
    %334 = vmatpush.bf16.msra.mxu0 %v179
    %335 = vmatpush.bf16.msra.mxu0 %v176
    %336 = vmatpush.bf16.msra.mxu0 %v173
    %337 = vmatpush.bf16.msra.mxu0 %v170
    %338 = vmatmul.bf16.gmra.mxu0 %v316
    %v339 = vpop.f32.mrf.mxu0
    %v340 = vadd.f32 0.0, %v339
    %v341 = vpop.f32.mrf.mxu0
    %342 = vdwg.mxu0
    %343 = vmatpush.bf16.msra.mxu0 %v192
    %344 = vmatpush.bf16.msra.mxu0 %v189
    %345 = vmatpush.bf16.msra.mxu0 %v186
    %346 = vmatpush.bf16.msra.mxu0 %v183
    %347 = vmatpush.bf16.msra.mxu0 %v180
    %348 = vmatpush.bf16.msra.mxu0 %v177
    %349 = vmatpush.bf16.msra.mxu0 %v174
    %350 = vmatpush.bf16.msra.mxu0 %v171
    %351 = vmatmul.bf16.gmra.mxu0 %v316
    %v352 = vpop.f32.mrf.mxu0
    %v353 = vadd.f32 0.0, %v352
    %v354 = vpop.f32.mrf.mxu0
    %355 = vdwg.mxu0
    %v356 = vadd.f32 %v315, %v327
    %v357 = vxor.u32 %v356, 2147483648
    %v358 = vmul.f32 %v357, 1.442695
    %v359 = vpow.pop %v358
    %v360 = vadd.f32 %v359, 1.0
    %v361 = vrcp.pop %v360
    %v362 = vmul.f32 %v360, %v361
    %v363 = vsub.f32 1.0, %v362
    %v364 = vmul.f32 %v361, %v363
    %v365 = vadd.f32 %v361, %v364
    %vm366 = vweird.f32 %v360
    %vm367 = vweird.f32 %v361
    %vm368 = vmor %vm366, %vm367
    %v369 = vsel %vm368, %v361, %v365
    %v370 = vand.u32 2147483647, %v360
    %vm371 = vcmp.eq.f32.partialorder %v370, 8.507059e+37
    %v372 = vand.u32 %v360, 2147483648
    %v373 = vor.u32 1.1754944e-38, %v372
    %v374 = vsel %vm371, %v373, %v369
    %v375 = vmul.f32 1.0, %v374
    %v377 = vrot.slane %v315, 2
    %v379 = vadd.f32 %v377, %v340
    %v380 = vxor.u32 %v379, 2147483648
    %v381 = vmul.f32 %v380, 1.442695
    %v382 = vpow.pop %v381
    %v383 = vadd.f32 %v382, 1.0
    %v384 = vrcp.pop %v383
    %v385 = vmul.f32 %v383, %v384
    %v386 = vsub.f32 1.0, %v385
    %v387 = vmul.f32 %v384, %v386
    %v388 = vadd.f32 %v384, %v387
    %vm389 = vweird.f32 %v383
    %vm390 = vweird.f32 %v384
    %vm391 = vmor %vm389, %vm390
    %v392 = vsel %vm391, %v384, %v388
    %v393 = vand.u32 2147483647, %v383
    %vm394 = vcmp.eq.f32.partialorder %v393, 8.507059e+37
    %v395 = vand.u32 %v383, 2147483648
    %v396 = vor.u32 1.1754944e-38, %v395
    %v397 = vsel %vm394, %v396, %v392
    %v398 = vmul.f32 1.0, %v397
    %v399 = vadd.f32 %v353, %v300
    %v400 = vmul.f32 %v375, %v399
    %v401 = vrot.slane %v315, 4
    %v403 = vadd.f32 %v401, %v400
    %v404 = vtanh.pop %v403
    %v405 = vsub.f32 1.0, %v398
    %v406 = vmul.f32 %v405, %v404
    %v407 = vmul.f32 %v398, %v311
    %v408 = vadd.f32 %v406, %v407
    %s409 = scalar_lea.vmem [#allocation8], 2
    %410 = vst [vmem:[%s409] sm:$0x3] %v408
    %s411 = scalar_lea.vmem [#allocation3], 6
    %v412 = vld [vmem:[%s411] sm:$0x7]
    %v413 = vunpack.c.l.bf16 %v412
    %v414 = vpack.c.bf16 %v408, %v408
    %415 = vmatpush.bf16.msra.mxu0 %v190
    %416 = vmatpush.bf16.msra.mxu0 %v187
    %417 = vmatpush.bf16.msra.mxu0 %v184
    %418 = vmatpush.bf16.msra.mxu0 %v181
    %419 = vmatpush.bf16.msra.mxu0 %v178
    %420 = vmatpush.bf16.msra.mxu0 %v175
    %421 = vmatpush.bf16.msra.mxu0 %v172
    %422 = vmatpush.bf16.msra.mxu0 %v169
    %423 = vmatmul.bf16.gmra.mxu0 %v414
    %v424 = vpop.f32.mrf.mxu0
    %v425 = vadd.f32 0.0, %v424
    %v426 = vpop.f32.mrf.mxu0
    %427 = vdwg.mxu0
    %428 = vmatpush.bf16.msra.mxu0 %v191
    %429 = vmatpush.bf16.msra.mxu0 %v188
    %430 = vmatpush.bf16.msra.mxu0 %v185
    %431 = vmatpush.bf16.msra.mxu0 %v182
    %432 = vmatpush.bf16.msra.mxu0 %v179
    %433 = vmatpush.bf16.msra.mxu0 %v176
    %434 = vmatpush.bf16.msra.mxu0 %v173
    %435 = vmatpush.bf16.msra.mxu0 %v170
    %436 = vmatmul.bf16.gmra.mxu0 %v414
    %v437 = vpop.f32.mrf.mxu0
    %v438 = vadd.f32 0.0, %v437
    %v439 = vpop.f32.mrf.mxu0
    %440 = vdwg.mxu0
    %441 = vmatpush.bf16.msra.mxu0 %v192
    %442 = vmatpush.bf16.msra.mxu0 %v189
    %443 = vmatpush.bf16.msra.mxu0 %v186
    %444 = vmatpush.bf16.msra.mxu0 %v183
    %445 = vmatpush.bf16.msra.mxu0 %v180
    %446 = vmatpush.bf16.msra.mxu0 %v177
    %447 = vmatpush.bf16.msra.mxu0 %v174
    %448 = vmatpush.bf16.msra.mxu0 %v171
    %449 = vmatmul.bf16.gmra.mxu0 %v414
    %v450 = vpop.f32.mrf.mxu0
    %v451 = vadd.f32 0.0, %v450
    %v452 = vpop.f32.mrf.mxu0
    %453 = vdwg.mxu0
    %v454 = vadd.f32 %v413, %v425
    %v455 = vxor.u32 %v454, 2147483648
    %v456 = vmul.f32 %v455, 1.442695
    %v457 = vpow.pop %v456
    %v458 = vadd.f32 %v457, 1.0
    %v459 = vrcp.pop %v458
    %v460 = vmul.f32 %v458, %v459
    %v461 = vsub.f32 1.0, %v460
    %v462 = vmul.f32 %v459, %v461
    %v463 = vadd.f32 %v459, %v462
    %vm464 = vweird.f32 %v458
    %vm465 = vweird.f32 %v459
    %vm466 = vmor %vm464, %vm465
    %v467 = vsel %vm466, %v459, %v463
    %v468 = vand.u32 2147483647, %v458
    %vm469 = vcmp.eq.f32.partialorder %v468, 8.507059e+37
    %v470 = vand.u32 %v458, 2147483648
    %v471 = vor.u32 1.1754944e-38, %v470
    %v472 = vsel %vm469, %v471, %v467
    %v473 = vmul.f32 1.0, %v472
    %v475 = vrot.slane %v413, 2
    %v477 = vadd.f32 %v475, %v438
    %v478 = vxor.u32 %v477, 2147483648
    %v479 = vmul.f32 %v478, 1.442695
    %v480 = vpow.pop %v479
    %v481 = vadd.f32 %v480, 1.0
    %v482 = vrcp.pop %v481
    %v483 = vmul.f32 %v481, %v482
    %v484 = vsub.f32 1.0, %v483
    %v485 = vmul.f32 %v482, %v484
    %v486 = vadd.f32 %v482, %v485
    %vm487 = vweird.f32 %v481
    %vm488 = vweird.f32 %v482
    %vm489 = vmor %vm487, %vm488
    %v490 = vsel %vm489, %v482, %v486
    %v491 = vand.u32 2147483647, %v481
    %vm492 = vcmp.eq.f32.partialorder %v491, 8.507059e+37
    %v493 = vand.u32 %v481, 2147483648
    %v494 = vor.u32 1.1754944e-38, %v493
    %v495 = vsel %vm492, %v494, %v490
    %v496 = vmul.f32 1.0, %v495
    %v497 = vadd.f32 %v451, %v300
    %v498 = vmul.f32 %v473, %v497
    %v499 = vrot.slane %v413, 4
    %v501 = vadd.f32 %v499, %v498
    %v502 = vtanh.pop %v501
    %v503 = vsub.f32 1.0, %v496
    %v504 = vmul.f32 %v503, %v502
    %v505 = vmul.f32 %v496, %v408
    %v506 = vadd.f32 %v504, %v505
    %s507 = scalar_lea.vmem [#allocation8], 4
    %508 = vst [vmem:[%s507] sm:$0x3] %v506
    %s509 = scalar_lea.vmem [#allocation3], 9
    %v510 = vld [vmem:[%s509] sm:$0x7]
    %v511 = vunpack.c.l.bf16 %v510
    %v512 = vpack.c.bf16 %v506, %v506
    %513 = vmatpush.bf16.msra.mxu0 %v190
    %514 = vmatpush.bf16.msra.mxu0 %v187
    %515 = vmatpush.bf16.msra.mxu0 %v184
    %516 = vmatpush.bf16.msra.mxu0 %v181
    %517 = vmatpush.bf16.msra.mxu0 %v178
    %518 = vmatpush.bf16.msra.mxu0 %v175
    %519 = vmatpush.bf16.msra.mxu0 %v172
    %520 = vmatpush.bf16.msra.mxu0 %v169
    %521 = vmatmul.bf16.gmra.mxu0 %v512
    %v522 = vpop.f32.mrf.mxu0
    %v523 = vadd.f32 0.0, %v522
    %v524 = vpop.f32.mrf.mxu0
    %525 = vdwg.mxu0
    %526 = vmatpush.bf16.msra.mxu0 %v191
    %527 = vmatpush.bf16.msra.mxu0 %v188
    %528 = vmatpush.bf16.msra.mxu0 %v185
    %529 = vmatpush.bf16.msra.mxu0 %v182
    %530 = vmatpush.bf16.msra.mxu0 %v179
    %531 = vmatpush.bf16.msra.mxu0 %v176
    %532 = vmatpush.bf16.msra.mxu0 %v173
    %533 = vmatpush.bf16.msra.mxu0 %v170
    %534 = vmatmul.bf16.gmra.mxu0 %v512
    %v535 = vpop.f32.mrf.mxu0
    %v536 = vadd.f32 0.0, %v535
    %v537 = vpop.f32.mrf.mxu0
    %538 = vdwg.mxu0
    %539 = vmatpush.bf16.msra.mxu0 %v192
    %540 = vmatpush.bf16.msra.mxu0 %v189
    %541 = vmatpush.bf16.msra.mxu0 %v186
    %542 = vmatpush.bf16.msra.mxu0 %v183
    %543 = vmatpush.bf16.msra.mxu0 %v180
    %544 = vmatpush.bf16.msra.mxu0 %v177
    %545 = vmatpush.bf16.msra.mxu0 %v174
    %546 = vmatpush.bf16.msra.mxu0 %v171
    %547 = vmatmul.bf16.gmra.mxu0 %v512
    %v548 = vpop.f32.mrf.mxu0
    %v549 = vadd.f32 0.0, %v548
    %v550 = vpop.f32.mrf.mxu0
    %551 = vdwg.mxu0
    %v552 = vadd.f32 %v511, %v523
    %v553 = vxor.u32 %v552, 2147483648
    %v554 = vmul.f32 %v553, 1.442695
    %v555 = vpow.pop %v554
    %v556 = vadd.f32 %v555, 1.0
    %v557 = vrcp.pop %v556
    %v558 = vmul.f32 %v556, %v557
    %v559 = vsub.f32 1.0, %v558
    %v560 = vmul.f32 %v557, %v559
    %v561 = vadd.f32 %v557, %v560
    %vm562 = vweird.f32 %v556
    %vm563 = vweird.f32 %v557
    %vm564 = vmor %vm562, %vm563
    %v565 = vsel %vm564, %v557, %v561
    %v566 = vand.u32 2147483647, %v556
    %vm567 = vcmp.eq.f32.partialorder %v566, 8.507059e+37
    %v568 = vand.u32 %v556, 2147483648
    %v569 = vor.u32 1.1754944e-38, %v568
    %v570 = vsel %vm567, %v569, %v565
    %v571 = vmul.f32 1.0, %v570
    %v573 = vrot.slane %v511, 2
    %v575 = vadd.f32 %v573, %v536
    %v576 = vxor.u32 %v575, 2147483648
    %v577 = vmul.f32 %v576, 1.442695
    %v578 = vpow.pop %v577
    %v579 = vadd.f32 %v578, 1.0
    %v580 = vrcp.pop %v579
    %v581 = vmul.f32 %v579, %v580
    %v582 = vsub.f32 1.0, %v581
    %v583 = vmul.f32 %v580, %v582
    %v584 = vadd.f32 %v580, %v583
    %vm585 = vweird.f32 %v579
    %vm586 = vweird.f32 %v580
    %vm587 = vmor %vm585, %vm586
    %v588 = vsel %vm587, %v580, %v584
    %v589 = vand.u32 2147483647, %v579
    %vm590 = vcmp.eq.f32.partialorder %v589, 8.507059e+37
    %v591 = vand.u32 %v579, 2147483648
    %v592 = vor.u32 1.1754944e-38, %v591
    %v593 = vsel %vm590, %v592, %v588
    %v594 = vmul.f32 1.0, %v593
    %v595 = vadd.f32 %v549, %v300
    %v596 = vmul.f32 %v571, %v595
    %v597 = vrot.slane %v511, 4
    %v599 = vadd.f32 %v597, %v596
    %v600 = vtanh.pop %v599
    %v601 = vsub.f32 1.0, %v594
    %v602 = vmul.f32 %v601, %v600
    %v603 = vmul.f32 %v594, %v506
    %v604 = vadd.f32 %v602, %v603
    %s605 = scalar_lea.vmem [#allocation8], 6
    %606 = vst [vmem:[%s605] sm:$0x3] %v604
    %s607 = scalar_lea.vmem [#allocation3], 12
    %v608 = vld [vmem:[%s607] sm:$0x7]
    %v609 = vunpack.c.l.bf16 %v608
    %v610 = vpack.c.bf16 %v604, %v604
    %611 = vmatpush.bf16.msra.mxu0 %v190
    %612 = vmatpush.bf16.msra.mxu0 %v187
    %613 = vmatpush.bf16.msra.mxu0 %v184
    %614 = vmatpush.bf16.msra.mxu0 %v181
    %615 = vmatpush.bf16.msra.mxu0 %v178
    %616 = vmatpush.bf16.msra.mxu0 %v175
    %617 = vmatpush.bf16.msra.mxu0 %v172
    %618 = vmatpush.bf16.msra.mxu0 %v169
    %619 = vmatmul.bf16.gmra.mxu0 %v610
    %v620 = vpop.f32.mrf.mxu0
    %v621 = vadd.f32 0.0, %v620
    %v622 = vpop.f32.mrf.mxu0
    %623 = vdwg.mxu0
    %624 = vmatpush.bf16.msra.mxu0 %v191
    %625 = vmatpush.bf16.msra.mxu0 %v188
    %626 = vmatpush.bf16.msra.mxu0 %v185
    %627 = vmatpush.bf16.msra.mxu0 %v182
    %628 = vmatpush.bf16.msra.mxu0 %v179
    %629 = vmatpush.bf16.msra.mxu0 %v176
    %630 = vmatpush.bf16.msra.mxu0 %v173
    %631 = vmatpush.bf16.msra.mxu0 %v170
    %632 = vmatmul.bf16.gmra.mxu0 %v610
    %v633 = vpop.f32.mrf.mxu0
    %v634 = vadd.f32 0.0, %v633
    %v635 = vpop.f32.mrf.mxu0
    %636 = vdwg.mxu0
    %637 = vmatpush.bf16.msra.mxu0 %v192
    %638 = vmatpush.bf16.msra.mxu0 %v189
    %639 = vmatpush.bf16.msra.mxu0 %v186
    %640 = vmatpush.bf16.msra.mxu0 %v183
    %641 = vmatpush.bf16.msra.mxu0 %v180
    %642 = vmatpush.bf16.msra.mxu0 %v177
    %643 = vmatpush.bf16.msra.mxu0 %v174
    %644 = vmatpush.bf16.msra.mxu0 %v171
    %645 = vmatmul.bf16.gmra.mxu0 %v610
    %v646 = vpop.f32.mrf.mxu0
    %v647 = vadd.f32 0.0, %v646
    %v648 = vpop.f32.mrf.mxu0
    %649 = vdwg.mxu0
    %v650 = vadd.f32 %v609, %v621
    %v651 = vxor.u32 %v650, 2147483648
    %v652 = vmul.f32 %v651, 1.442695
    %v653 = vpow.pop %v652
    %v654 = vadd.f32 %v653, 1.0
    %v655 = vrcp.pop %v654
    %v656 = vmul.f32 %v654, %v655
    %v657 = vsub.f32 1.0, %v656
    %v658 = vmul.f32 %v655, %v657
    %v659 = vadd.f32 %v655, %v658
    %vm660 = vweird.f32 %v654
    %vm661 = vweird.f32 %v655
    %vm662 = vmor %vm660, %vm661
    %v663 = vsel %vm662, %v655, %v659
    %v664 = vand.u32 2147483647, %v654
    %vm665 = vcmp.eq.f32.partialorder %v664, 8.507059e+37
    %v666 = vand.u32 %v654, 2147483648
    %v667 = vor.u32 1.1754944e-38, %v666
    %v668 = vsel %vm665, %v667, %v663
    %v669 = vmul.f32 1.0, %v668
    %v671 = vrot.slane %v609, 2
    %v673 = vadd.f32 %v671, %v634
    %v674 = vxor.u32 %v673, 2147483648
    %v675 = vmul.f32 %v674, 1.442695
    %v676 = vpow.pop %v675
    %v677 = vadd.f32 %v676, 1.0
    %v678 = vrcp.pop %v677
    %v679 = vmul.f32 %v677, %v678
    %v680 = vsub.f32 1.0, %v679
    %v681 = vmul.f32 %v678, %v680
    %v682 = vadd.f32 %v678, %v681
    %vm683 = vweird.f32 %v677
    %vm684 = vweird.f32 %v678
    %vm685 = vmor %vm683, %vm684
    %v686 = vsel %vm685, %v678, %v682
    %v687 = vand.u32 2147483647, %v677
    %vm688 = vcmp.eq.f32.partialorder %v687, 8.507059e+37
    %v689 = vand.u32 %v677, 2147483648
    %v690 = vor.u32 1.1754944e-38, %v689
    %v691 = vsel %vm688, %v690, %v686
    %v692 = vmul.f32 1.0, %v691
    %v693 = vadd.f32 %v647, %v300
    %v694 = vmul.f32 %v669, %v693
    %v695 = vrot.slane %v609, 4
    %v697 = vadd.f32 %v695, %v694
    %v698 = vtanh.pop %v697
    %v699 = vsub.f32 1.0, %v692
    %v700 = vmul.f32 %v699, %v698
    %v701 = vmul.f32 %v692, %v604
    %v702 = vadd.f32 %v700, %v701
    %s703 = scalar_lea.vmem [#allocation8], 8
    %704 = vst [vmem:[%s703] sm:$0x3] %v702
    %s705 = scalar_lea.vmem [#allocation3], 15
    %v706 = vld [vmem:[%s705] sm:$0x7]
    %v707 = vunpack.c.l.bf16 %v706
    %v708 = vpack.c.bf16 %v702, %v702
    %709 = vmatpush.bf16.msra.mxu0 %v190
    %710 = vmatpush.bf16.msra.mxu0 %v187
    %711 = vmatpush.bf16.msra.mxu0 %v184
    %712 = vmatpush.bf16.msra.mxu0 %v181
    %713 = vmatpush.bf16.msra.mxu0 %v178
    %714 = vmatpush.bf16.msra.mxu0 %v175
    %715 = vmatpush.bf16.msra.mxu0 %v172
    %716 = vmatpush.bf16.msra.mxu0 %v169
    %717 = vmatmul.bf16.gmra.mxu0 %v708
    %v718 = vpop.f32.mrf.mxu0
    %v719 = vadd.f32 0.0, %v718
    %v720 = vpop.f32.mrf.mxu0
    %721 = vdwg.mxu0
    %722 = vmatpush.bf16.msra.mxu0 %v191
    %723 = vmatpush.bf16.msra.mxu0 %v188
    %724 = vmatpush.bf16.msra.mxu0 %v185
    %725 = vmatpush.bf16.msra.mxu0 %v182
    %726 = vmatpush.bf16.msra.mxu0 %v179
    %727 = vmatpush.bf16.msra.mxu0 %v176
    %728 = vmatpush.bf16.msra.mxu0 %v173
    %729 = vmatpush.bf16.msra.mxu0 %v170
    %730 = vmatmul.bf16.gmra.mxu0 %v708
    %v731 = vpop.f32.mrf.mxu0
    %v732 = vadd.f32 0.0, %v731
    %v733 = vpop.f32.mrf.mxu0
    %734 = vdwg.mxu0
    %735 = vmatpush.bf16.msra.mxu0 %v192
    %736 = vmatpush.bf16.msra.mxu0 %v189
    %737 = vmatpush.bf16.msra.mxu0 %v186
    %738 = vmatpush.bf16.msra.mxu0 %v183
    %739 = vmatpush.bf16.msra.mxu0 %v180
    %740 = vmatpush.bf16.msra.mxu0 %v177
    %741 = vmatpush.bf16.msra.mxu0 %v174
    %742 = vmatpush.bf16.msra.mxu0 %v171
    %743 = vmatmul.bf16.gmra.mxu0 %v708
    %v744 = vpop.f32.mrf.mxu0
    %v745 = vadd.f32 0.0, %v744
    %v746 = vpop.f32.mrf.mxu0
    %747 = vdwg.mxu0
    %v748 = vadd.f32 %v707, %v719
    %v749 = vxor.u32 %v748, 2147483648
    %v750 = vmul.f32 %v749, 1.442695
    %v751 = vpow.pop %v750
    %v752 = vadd.f32 %v751, 1.0
    %v753 = vrcp.pop %v752
    %v754 = vmul.f32 %v752, %v753
    %v755 = vsub.f32 1.0, %v754
    %v756 = vmul.f32 %v753, %v755
    %v757 = vadd.f32 %v753, %v756
    %vm758 = vweird.f32 %v752
    %vm759 = vweird.f32 %v753
    %vm760 = vmor %vm758, %vm759
    %v761 = vsel %vm760, %v753, %v757
    %v762 = vand.u32 2147483647, %v752
    %vm763 = vcmp.eq.f32.partialorder %v762, 8.507059e+37
    %v764 = vand.u32 %v752, 2147483648
    %v765 = vor.u32 1.1754944e-38, %v764
    %v766 = vsel %vm763, %v765, %v761
    %v767 = vmul.f32 1.0, %v766
    %v769 = vrot.slane %v707, 2
    %v771 = vadd.f32 %v769, %v732
    %v772 = vxor.u32 %v771, 2147483648
    %v773 = vmul.f32 %v772, 1.442695
    %v774 = vpow.pop %v773
    %v775 = vadd.f32 %v774, 1.0
    %v776 = vrcp.pop %v775
    %v777 = vmul.f32 %v775, %v776
    %v778 = vsub.f32 1.0, %v777
    %v779 = vmul.f32 %v776, %v778
    %v780 = vadd.f32 %v776, %v779
    %vm781 = vweird.f32 %v775
    %vm782 = vweird.f32 %v776
    %vm783 = vmor %vm781, %vm782
    %v784 = vsel %vm783, %v776, %v780
    %v785 = vand.u32 2147483647, %v775
    %vm786 = vcmp.eq.f32.partialorder %v785, 8.507059e+37
    %v787 = vand.u32 %v775, 2147483648
    %v788 = vor.u32 1.1754944e-38, %v787
    %v789 = vsel %vm786, %v788, %v784
    %v790 = vmul.f32 1.0, %v789
    %v791 = vadd.f32 %v745, %v300
    %v792 = vmul.f32 %v767, %v791
    %v793 = vrot.slane %v707, 4
    %v795 = vadd.f32 %v793, %v792
    %v796 = vtanh.pop %v795
    %v797 = vsub.f32 1.0, %v790
    %v798 = vmul.f32 %v797, %v796
    %v799 = vmul.f32 %v790, %v702
    %v800 = vadd.f32 %v798, %v799
    %s801 = scalar_lea.vmem [#allocation8], 10
    %802 = vst [vmem:[%s801] sm:$0x3] %v800
    %s803 = scalar_lea.vmem [#allocation3], 18
    %v804 = vld [vmem:[%s803] sm:$0x7]
    %v805 = vunpack.c.l.bf16 %v804
    %v806 = vpack.c.bf16 %v800, %v800
    %807 = vmatpush.bf16.msra.mxu0 %v190
    %808 = vmatpush.bf16.msra.mxu0 %v187
    %809 = vmatpush.bf16.msra.mxu0 %v184
    %810 = vmatpush.bf16.msra.mxu0 %v181
    %811 = vmatpush.bf16.msra.mxu0 %v178
    %812 = vmatpush.bf16.msra.mxu0 %v175
    %813 = vmatpush.bf16.msra.mxu0 %v172
    %814 = vmatpush.bf16.msra.mxu0 %v169
    %815 = vmatmul.bf16.gmra.mxu0 %v806
    %v816 = vpop.f32.mrf.mxu0
    %v817 = vadd.f32 0.0, %v816
    %v818 = vpop.f32.mrf.mxu0
    %819 = vdwg.mxu0
    %820 = vmatpush.bf16.msra.mxu0 %v191
    %821 = vmatpush.bf16.msra.mxu0 %v188
    %822 = vmatpush.bf16.msra.mxu0 %v185
    %823 = vmatpush.bf16.msra.mxu0 %v182
    %824 = vmatpush.bf16.msra.mxu0 %v179
    %825 = vmatpush.bf16.msra.mxu0 %v176
    %826 = vmatpush.bf16.msra.mxu0 %v173
    %827 = vmatpush.bf16.msra.mxu0 %v170
    %828 = vmatmul.bf16.gmra.mxu0 %v806
    %v829 = vpop.f32.mrf.mxu0
    %v830 = vadd.f32 0.0, %v829
    %v831 = vpop.f32.mrf.mxu0
    %832 = vdwg.mxu0
    %833 = vmatpush.bf16.msra.mxu0 %v192
    %834 = vmatpush.bf16.msra.mxu0 %v189
    %835 = vmatpush.bf16.msra.mxu0 %v186
    %836 = vmatpush.bf16.msra.mxu0 %v183
    %837 = vmatpush.bf16.msra.mxu0 %v180
    %838 = vmatpush.bf16.msra.mxu0 %v177
    %839 = vmatpush.bf16.msra.mxu0 %v174
    %840 = vmatpush.bf16.msra.mxu0 %v171
    %841 = vmatmul.bf16.gmra.mxu0 %v806
    %v842 = vpop.f32.mrf.mxu0
    %v843 = vadd.f32 0.0, %v842
    %v844 = vpop.f32.mrf.mxu0
    %845 = vdwg.mxu0
    %v846 = vadd.f32 %v805, %v817
    %v847 = vxor.u32 %v846, 2147483648
    %v848 = vmul.f32 %v847, 1.442695
    %v849 = vpow.pop %v848
    %v850 = vadd.f32 %v849, 1.0
    %v851 = vrcp.pop %v850
    %v852 = vmul.f32 %v850, %v851
    %v853 = vsub.f32 1.0, %v852
    %v854 = vmul.f32 %v851, %v853
    %v855 = vadd.f32 %v851, %v854
    %vm856 = vweird.f32 %v850
    %vm857 = vweird.f32 %v851
    %vm858 = vmor %vm856, %vm857
    %v859 = vsel %vm858, %v851, %v855
    %v860 = vand.u32 2147483647, %v850
    %vm861 = vcmp.eq.f32.partialorder %v860, 8.507059e+37
    %v862 = vand.u32 %v850, 2147483648
    %v863 = vor.u32 1.1754944e-38, %v862
    %v864 = vsel %vm861, %v863, %v859
    %v865 = vmul.f32 1.0, %v864
    %v867 = vrot.slane %v805, 2
    %v869 = vadd.f32 %v867, %v830
    %v870 = vxor.u32 %v869, 2147483648
    %v871 = vmul.f32 %v870, 1.442695
    %v872 = vpow.pop %v871
    %v873 = vadd.f32 %v872, 1.0
    %v874 = vrcp.pop %v873
    %v875 = vmul.f32 %v873, %v874
    %v876 = vsub.f32 1.0, %v875
    %v877 = vmul.f32 %v874, %v876
    %v878 = vadd.f32 %v874, %v877
    %vm879 = vweird.f32 %v873
    %vm880 = vweird.f32 %v874
    %vm881 = vmor %vm879, %vm880
    %v882 = vsel %vm881, %v874, %v878
    %v883 = vand.u32 2147483647, %v873
    %vm884 = vcmp.eq.f32.partialorder %v883, 8.507059e+37
    %v885 = vand.u32 %v873, 2147483648
    %v886 = vor.u32 1.1754944e-38, %v885
    %v887 = vsel %vm884, %v886, %v882
    %v888 = vmul.f32 1.0, %v887
    %v889 = vadd.f32 %v843, %v300
    %v890 = vmul.f32 %v865, %v889
    %v891 = vrot.slane %v805, 4
    %v893 = vadd.f32 %v891, %v890
    %v894 = vtanh.pop %v893
    %v895 = vsub.f32 1.0, %v888
    %v896 = vmul.f32 %v895, %v894
    %v897 = vmul.f32 %v888, %v800
    %v898 = vadd.f32 %v896, %v897
    %s899 = scalar_lea.vmem [#allocation8], 12
    %900 = vst [vmem:[%s899] sm:$0x3] %v898
    %s901 = scalar_lea.vmem [#allocation3], 21
    %v902 = vld [vmem:[%s901] sm:$0x7]
    %v903 = vunpack.c.l.bf16 %v902
    %v904 = vpack.c.bf16 %v898, %v898
    %905 = vmatpush.bf16.msra.mxu0 %v190
    %906 = vmatpush.bf16.msra.mxu0 %v187
    %907 = vmatpush.bf16.msra.mxu0 %v184
    %908 = vmatpush.bf16.msra.mxu0 %v181
    %909 = vmatpush.bf16.msra.mxu0 %v178
    %910 = vmatpush.bf16.msra.mxu0 %v175
    %911 = vmatpush.bf16.msra.mxu0 %v172
    %912 = vmatpush.bf16.msra.mxu0 %v169
    %913 = vmatmul.bf16.gmra.mxu0 %v904
    %v914 = vpop.f32.mrf.mxu0
    %v915 = vadd.f32 0.0, %v914
    %v916 = vpop.f32.mrf.mxu0
    %917 = vdwg.mxu0
    %918 = vmatpush.bf16.msra.mxu0 %v191
    %919 = vmatpush.bf16.msra.mxu0 %v188
    %920 = vmatpush.bf16.msra.mxu0 %v185
    %921 = vmatpush.bf16.msra.mxu0 %v182
    %922 = vmatpush.bf16.msra.mxu0 %v179
    %923 = vmatpush.bf16.msra.mxu0 %v176
    %924 = vmatpush.bf16.msra.mxu0 %v173
    %925 = vmatpush.bf16.msra.mxu0 %v170
    %926 = vmatmul.bf16.gmra.mxu0 %v904
    %v927 = vpop.f32.mrf.mxu0
    %v928 = vadd.f32 0.0, %v927
    %v929 = vpop.f32.mrf.mxu0
    %930 = vdwg.mxu0
    %931 = vmatpush.bf16.msra.mxu0 %v192
    %932 = vmatpush.bf16.msra.mxu0 %v189
    %933 = vmatpush.bf16.msra.mxu0 %v186
    %934 = vmatpush.bf16.msra.mxu0 %v183
    %935 = vmatpush.bf16.msra.mxu0 %v180
    %936 = vmatpush.bf16.msra.mxu0 %v177
    %937 = vmatpush.bf16.msra.mxu0 %v174
    %938 = vmatpush.bf16.msra.mxu0 %v171
    %939 = vmatmul.bf16.gmra.mxu0 %v904
    %v940 = vpop.f32.mrf.mxu0
    %v941 = vadd.f32 0.0, %v940
    %v942 = vpop.f32.mrf.mxu0
    %943 = vdwg.mxu0
    %v944 = vadd.f32 %v903, %v915
    %v945 = vxor.u32 %v944, 2147483648
    %v946 = vmul.f32 %v945, 1.442695
    %v947 = vpow.pop %v946
    %v948 = vadd.f32 %v947, 1.0
    %v949 = vrcp.pop %v948
    %v950 = vmul.f32 %v948, %v949
    %v951 = vsub.f32 1.0, %v950
    %v952 = vmul.f32 %v949, %v951
    %v953 = vadd.f32 %v949, %v952
    %vm954 = vweird.f32 %v948
    %vm955 = vweird.f32 %v949
    %vm956 = vmor %vm954, %vm955
    %v957 = vsel %vm956, %v949, %v953
    %v958 = vand.u32 2147483647, %v948
    %vm959 = vcmp.eq.f32.partialorder %v958, 8.507059e+37
    %v960 = vand.u32 %v948, 2147483648
    %v961 = vor.u32 1.1754944e-38, %v960
    %v962 = vsel %vm959, %v961, %v957
    %v963 = vmul.f32 1.0, %v962
    %v965 = vrot.slane %v903, 2
    %v967 = vadd.f32 %v965, %v928
    %v968 = vxor.u32 %v967, 2147483648
    %v969 = vmul.f32 %v968, 1.442695
    %v970 = vpow.pop %v969
    %v971 = vadd.f32 %v970, 1.0
    %v972 = vrcp.pop %v971
    %v973 = vmul.f32 %v971, %v972
    %v974 = vsub.f32 1.0, %v973
    %v975 = vmul.f32 %v972, %v974
    %v976 = vadd.f32 %v972, %v975
    %vm977 = vweird.f32 %v971
    %vm978 = vweird.f32 %v972
    %vm979 = vmor %vm977, %vm978
    %v980 = vsel %vm979, %v972, %v976
    %v981 = vand.u32 2147483647, %v971
    %vm982 = vcmp.eq.f32.partialorder %v981, 8.507059e+37
    %v983 = vand.u32 %v971, 2147483648
    %v984 = vor.u32 1.1754944e-38, %v983
    %v985 = vsel %vm982, %v984, %v980
    %v986 = vmul.f32 1.0, %v985
    %v987 = vadd.f32 %v941, %v300
    %v988 = vmul.f32 %v963, %v987
    %v989 = vrot.slane %v903, 4
    %v991 = vadd.f32 %v989, %v988
    %v992 = vtanh.pop %v991
    %v993 = vsub.f32 1.0, %v986
    %v994 = vmul.f32 %v993, %v992
    %v995 = vmul.f32 %v986, %v898
    %v996 = vadd.f32 %v994, %v995
    %s997 = scalar_lea.vmem [#allocation8], 14
    %998 = vst [vmem:[%s997] sm:$0x3] %v996
    %999 = vst [vmem:[#allocation2] sm:$0x3] %v996
    // Predicated region
    $region26: #{tpu_custom_call.1} parent=1 // pred_check
      _
    $region27: #{tpu_custom_call.1} parent=1 // pred_check_branch
      %1001 = sbr.rel (0) target = $region29
    $region28: #{tpu_custom_call.1} parent=1 // pred_region
      %1003 = vsyncadd [#allocation5], 0
      %s1004 = sshll.u32 [#allocation8], 4
      %s1005 = int_to_ptr.vmem [resolvable:$true] %s1004
      %s1006 = sshll.u32 %s3, 4
      %s1007 = int_to_ptr.hbm [resolvable:$true] %s1006
      %1012 = dma.vmem_to_hbm [thread:$0]  %s1005, 256, %s1007, [#allocation5], 32, 32, 2
    $region29: #{tpu_custom_call.1} parent=1 // pred_fallthru
      _
    // Predicated region
    $region30: #{tpu_custom_call.1} parent=1 // pred_check
      _
    $region31: #{tpu_custom_call.1} parent=1 // pred_check_branch
      %1014 = sbr.rel (0) target = $region33
    $region32: #{tpu_custom_call.1} parent=1 // pred_region
      %1016 = dma.done [#allocation5], 256
    $region33: #{tpu_custom_call.1} parent=1 // pred_fallthru
      _
    %1017 = vsyncpa [#allocation4], 1
    %1018 = vsyncpa [#allocation7], 1
    %1019 = vsyncpa [#allocation5], 1

</llo_original>
